<compile_context>
chip_gen: v7x
topology: tpu7x:2x2x1
jax: 0.10.0
libtpu: 0.0.40
codegen_flags: <defaults>
</compile_context>

<pallas_src>
import jax
import jax.numpy as jnp
from jax import lax
from jax.experimental import pallas as pl
from jax.experimental.pallas import tpu as pltpu

EPS = 1e-5


def _down_kernel(x_ref, w1_ref, g1_ref, b1_ref, w2_ref, g2_ref, b2_ref,
                 out_ref, pad1, pad2):
    N, H, Wp, C2 = x_ref.shape          # x is (N, H, Wp, 2*Cin): W pairs folded into lanes
    Cin = C2 // 2
    Hp = H // 2
    K1, Cmid = w1_ref.shape             # K1 = 9*Cin
    K2, Cout = w2_ref.shape             # K2 = 9*Cmid
    M = N * Hp * Wp

    # ---- MaxPool2d(kernel=2, stride=2) ----------------------------------
    # W-direction pairs already sit side-by-side in the lane dim; split H in
    # a layout-trivial reshape and take elementwise maxes (VPU only).
    x4 = x_ref[...].reshape(N * Hp, 2, Wp, C2)
    hmax = jnp.maximum(x4[:, 0], x4[:, 1])                   # (N*Hp, Wp, 2*Cin)
    pooled = jnp.maximum(hmax[..., :Cin], hmax[..., Cin:])   # (N*Hp, Wp, Cin)

    # ---- conv1 (3x3, SAME, no bias): single im2col matmul ---------------
    pad1[...] = jnp.zeros(pad1.shape, pad1.dtype)
    pad1[:, 1:Hp + 1, 1:Wp + 1, :] = pooled.reshape(N, Hp, Wp, Cin)
    patches1 = jnp.concatenate(
        [pad1[:, kh:kh + Hp, kw:kw + Wp, :].reshape(M, Cin)
         for kh in range(3) for kw in range(3)], axis=1)      # (M, 9*Cin)
    acc = jnp.dot(patches1, w1_ref[...], preferred_element_type=jnp.float32)

    # ---- BatchNorm2d (single-pass batch stats, biased var) + ReLU -------
    inv_m = 1.0 / M
    s1 = jnp.sum(acc, axis=0, keepdims=True)
    q1 = jnp.sum(acc * acc, axis=0, keepdims=True)
    mean1 = s1 * inv_m
    var1 = q1 * inv_m - mean1 * mean1
    h = (acc - mean1) * lax.rsqrt(var1 + EPS) * g1_ref[...] + b1_ref[...]
    h = jnp.maximum(h, 0.0)

    # ---- conv2 (3x3, SAME, no bias): single im2col matmul ---------------
    pad2[...] = jnp.zeros(pad2.shape, pad2.dtype)
    pad2[:, 1:Hp + 1, 1:Wp + 1, :] = h.reshape(N, Hp, Wp, Cmid)
    patches2 = jnp.concatenate(
        [pad2[:, kh:kh + Hp, kw:kw + Wp, :].reshape(M, Cmid)
         for kh in range(3) for kw in range(3)], axis=1)      # (M, 9*Cmid)
    acc2 = jnp.dot(patches2, w2_ref[...], preferred_element_type=jnp.float32)

    s2 = jnp.sum(acc2, axis=0, keepdims=True)
    q2 = jnp.sum(acc2 * acc2, axis=0, keepdims=True)
    mean2 = s2 * inv_m
    var2 = q2 * inv_m - mean2 * mean2
    y = (acc2 - mean2) * lax.rsqrt(var2 + EPS) * g2_ref[...] + b2_ref[...]
    y = jnp.maximum(y, 0.0)

    # ---- lane-dense store: (Cout, M), M = N*Hp*Wp is a multiple of 128 ---
    out_ref[...] = y.T


def down_pallas(x_nchw, w1_oihw, g1, b1, w2_oihw, g2, b2):
    N, Cin, H, W = x_nchw.shape
    Hp, Wp = H // 2, W // 2
    Cmid = w1_oihw.shape[0]
    Cout = w2_oihw.shape[0]
    M = N * Hp * Wp

    # NCHW -> NHWC, then fold the 2x2-pool W pairs into the lane dim.
    x = jnp.transpose(x_nchw, (0, 2, 3, 1)).astype(jnp.float32)
    x_packed = x.reshape(N, H, Wp, 2 * Cin)

    # OIHW -> (kh, kw, Cin, Cout) -> flattened im2col weights (9*Cin, Cout).
    w1 = jnp.transpose(w1_oihw, (2, 3, 1, 0)).reshape(9 * Cin, Cmid).astype(jnp.float32)
    w2 = jnp.transpose(w2_oihw, (2, 3, 1, 0)).reshape(9 * Cmid, Cout).astype(jnp.float32)

    g1r = g1.reshape(1, Cmid).astype(jnp.float32)
    b1r = b1.reshape(1, Cmid).astype(jnp.float32)
    g2r = g2.reshape(1, Cout).astype(jnp.float32)
    b2r = b2.reshape(1, Cout).astype(jnp.float32)

    vmem = pl.BlockSpec(memory_space=pltpu.MemorySpace.VMEM)
    out = pl.pallas_call(
        _down_kernel,
        out_shape=jax.ShapeDtypeStruct((Cout, M), jnp.float32),
        in_specs=[vmem] * 7,
        out_specs=vmem,
        scratch_shapes=[
            pltpu.VMEM((N, Hp + 2, Wp + 2, Cin), jnp.float32),   # conv1 halo pad
            pltpu.VMEM((N, Hp + 2, Wp + 2, Cmid), jnp.float32),  # conv2 halo pad
        ],
    )(x_packed, w1, g1r, b1r, w2, g2r, b2r)

    # (Cout, N*Hp*Wp) -> NCHW; pure wrapper-side layout plumbing.
    return out.reshape(Cout, N, Hp, Wp).transpose(1, 0, 2, 3)


def down_reference(x, w1, g1, b1, w2, g2, b2):
    """Pure-JAX reference matching the PyTorch module (training-mode BN)."""
    xp = lax.reduce_window(x, -jnp.inf, lax.max,
                           (1, 1, 2, 2), (1, 1, 2, 2), "VALID")

    def conv_bn_relu(h, w, g, b):
        y = lax.conv_general_dilated(h, w, (1, 1), "SAME",
                                     dimension_numbers=("NCHW", "OIHW", "NCHW"))
        mean = jnp.mean(y, axis=(0, 2, 3), keepdims=True)
        var = jnp.mean((y - mean) ** 2, axis=(0, 2, 3), keepdims=True)
        y = (y - mean) * lax.rsqrt(var + EPS)
        y = y * g.reshape(1, -1, 1, 1) + b.reshape(1, -1, 1, 1)
        return jnp.maximum(y, 0.0)

    h = conv_bn_relu(xp, w1, g1, b1)
    return conv_bn_relu(h, w2, g2, b2)


if __name__ == "__main__":
    key = jax.random.PRNGKey(0)
    kx, k1, k2, k3, k4, k5, k6 = jax.random.split(key, 7)

    N, Cin, H, W = 2, 4, 16, 16
    Cout = 8
    Cmid = Cout  # Down uses DoubleConv(in, out) -> mid = out

    x = jax.random.normal(kx, (N, Cin, H, W), jnp.float32)
    w1 = 0.25 * jax.random.normal(k1, (Cmid, Cin, 3, 3), jnp.float32)
    g1 = 1.0 + 0.1 * jax.random.normal(k2, (Cmid,), jnp.float32)
    b1 = 0.1 * jax.random.normal(k3, (Cmid,), jnp.float32)
    w2 = 0.25 * jax.random.normal(k4, (Cout, Cmid, 3, 3), jnp.float32)
    g2 = 1.0 + 0.1 * jax.random.normal(k5, (Cout,), jnp.float32)
    b2 = 0.1 * jax.random.normal(k6, (Cout,), jnp.float32)

    y = jax.block_until_ready(down_pallas(x, w1, g1, b1, w2, g2, b2))
    y_ref = jax.block_until_ready(down_reference(x, w1, g1, b1, w2, g2, b2))

    assert y.shape == (N, Cout, H // 2, W // 2), y.shape
    err = float(jnp.max(jnp.abs(y - y_ref)))
    if err < 3e-2:
        print("KERNEL_OK")
    else:
        print(f"MAX_ABS_ERR={err}")
</pallas_src>

<mosaic_0001>
module attributes {stable_mosaic.version = 11 : i64} {
  func.func @_down_kernel(%arg0: memref<2x16x8x8xf32, #tpu.memory_space<vmem>>, %arg1: memref<36x8xf32, #tpu.memory_space<vmem>>, %arg2: memref<1x8xf32, #tpu.memory_space<vmem>>, %arg3: memref<1x8xf32, #tpu.memory_space<vmem>>, %arg4: memref<72x8xf32, #tpu.memory_space<vmem>>, %arg5: memref<1x8xf32, #tpu.memory_space<vmem>>, %arg6: memref<1x8xf32, #tpu.memory_space<vmem>>, %arg7: memref<8x128xf32, #tpu.memory_space<vmem>>, %arg8: memref<2x10x10x4xf32, #tpu.memory_space<vmem>>, %arg9: memref<2x10x10x8xf32, #tpu.memory_space<vmem>>) attributes {dimension_semantics = [], scalar_prefetch = 0 : i64, scratch_operands = 2 : i64, tpu.core_type = #tpu.core_type<tc>} {
    %c0 = arith.constant 0 : index
    %c0_0 = arith.constant 0 : index
    %c0_1 = arith.constant 0 : index
    %c0_2 = arith.constant 0 : index
    %0 = vector.load %arg0[%c0, %c0_0, %c0_1, %c0_2] : memref<2x16x8x8xf32, #tpu.memory_space<vmem>>, vector<2x16x8x8xf32>
    %1 = vector.shape_cast %0 : vector<2x16x8x8xf32> to vector<16x2x8x8xf32>
    %2 = vector.extract_strided_slice %1 {offsets = [0, 0, 0, 0], sizes = [16, 1, 8, 8], strides = [1, 1, 1, 1]} : vector<16x2x8x8xf32> to vector<16x1x8x8xf32>
    %3 = vector.shape_cast %2 : vector<16x1x8x8xf32> to vector<16x8x8xf32>
    %4 = vector.extract_strided_slice %1 {offsets = [0, 1, 0, 0], sizes = [16, 1, 8, 8], strides = [1, 1, 1, 1]} : vector<16x2x8x8xf32> to vector<16x1x8x8xf32>
    %5 = vector.shape_cast %4 : vector<16x1x8x8xf32> to vector<16x8x8xf32>
    %6 = arith.maximumf %3, %5 : vector<16x8x8xf32>
    %7 = vector.extract_strided_slice %6 {offsets = [0, 0, 0], sizes = [16, 8, 4], strides = [1, 1, 1]} : vector<16x8x8xf32> to vector<16x8x4xf32>
    %8 = vector.extract_strided_slice %6 {offsets = [0, 0, 4], sizes = [16, 8, 4], strides = [1, 1, 1]} : vector<16x8x8xf32> to vector<16x8x4xf32>
    %9 = arith.maximumf %7, %8 : vector<16x8x4xf32>
    %cst = arith.constant 0.000000e+00 : f32
    %10 = vector.broadcast %cst : f32 to vector<2x10x10x4xf32>
    %c0_3 = arith.constant 0 : index
    %c0_4 = arith.constant 0 : index
    %c0_5 = arith.constant 0 : index
    %c0_6 = arith.constant 0 : index
    %11 = vector.load %arg8[%c0_3, %c0_4, %c0_5, %c0_6] : memref<2x10x10x4xf32, #tpu.memory_space<vmem>>, vector<2x10x10x4xf32>
    tpu.vector_store %arg8[%c0_3, %c0_4, %c0_5, %c0_6], %10 {strides = array<i32>} : memref<2x10x10x4xf32, #tpu.memory_space<vmem>>, vector<2x10x10x4xf32>,
    %12 = vector.shape_cast %9 : vector<16x8x4xf32> to vector<2x8x8x4xf32>
    %c0_7 = arith.constant 0 : index
    %c1 = arith.constant 1 : index
    %c1_8 = arith.constant 1 : index
    %c0_9 = arith.constant 0 : index
    %13 = vector.load %arg8[%c0_7, %c1, %c1_8, %c0_9] : memref<2x10x10x4xf32, #tpu.memory_space<vmem>>, vector<2x8x8x4xf32>
    tpu.vector_store %arg8[%c0_7, %c1, %c1_8, %c0_9], %12 {strides = array<i32>} : memref<2x10x10x4xf32, #tpu.memory_space<vmem>>, vector<2x8x8x4xf32>,
    %c0_10 = arith.constant 0 : index
    %c0_11 = arith.constant 0 : index
    %c0_12 = arith.constant 0 : index
    %c0_13 = arith.constant 0 : index
    %14 = vector.load %arg8[%c0_10, %c0_11, %c0_12, %c0_13] : memref<2x10x10x4xf32, #tpu.memory_space<vmem>>, vector<2x8x8x4xf32>
    %15 = vector.shape_cast %14 : vector<2x8x8x4xf32> to vector<128x4xf32>
    %c0_14 = arith.constant 0 : index
    %c0_15 = arith.constant 0 : index
    %c1_16 = arith.constant 1 : index
    %c0_17 = arith.constant 0 : index
    %16 = vector.load %arg8[%c0_14, %c0_15, %c1_16, %c0_17] : memref<2x10x10x4xf32, #tpu.memory_space<vmem>>, vector<2x8x8x4xf32>
    %17 = vector.shape_cast %16 : vector<2x8x8x4xf32> to vector<128x4xf32>
    %c0_18 = arith.constant 0 : index
    %c0_19 = arith.constant 0 : index
    %c2 = arith.constant 2 : index
    %c0_20 = arith.constant 0 : index
    %18 = vector.load %arg8[%c0_18, %c0_19, %c2, %c0_20] : memref<2x10x10x4xf32, #tpu.memory_space<vmem>>, vector<2x8x8x4xf32>
    %19 = vector.shape_cast %18 : vector<2x8x8x4xf32> to vector<128x4xf32>
    %c0_21 = arith.constant 0 : index
    %c1_22 = arith.constant 1 : index
    %c0_23 = arith.constant 0 : index
    %c0_24 = arith.constant 0 : index
    %20 = vector.load %arg8[%c0_21, %c1_22, %c0_23, %c0_24] : memref<2x10x10x4xf32, #tpu.memory_space<vmem>>, vector<2x8x8x4xf32>
    %21 = vector.shape_cast %20 : vector<2x8x8x4xf32> to vector<128x4xf32>
    %c0_25 = arith.constant 0 : index
    %c1_26 = arith.constant 1 : index
    %c1_27 = arith.constant 1 : index
    %c0_28 = arith.constant 0 : index
    %22 = vector.load %arg8[%c0_25, %c1_26, %c1_27, %c0_28] : memref<2x10x10x4xf32, #tpu.memory_space<vmem>>, vector<2x8x8x4xf32>
    %23 = vector.shape_cast %22 : vector<2x8x8x4xf32> to vector<128x4xf32>
    %c0_29 = arith.constant 0 : index
    %c1_30 = arith.constant 1 : index
    %c2_31 = arith.constant 2 : index
    %c0_32 = arith.constant 0 : index
    %24 = vector.load %arg8[%c0_29, %c1_30, %c2_31, %c0_32] : memref<2x10x10x4xf32, #tpu.memory_space<vmem>>, vector<2x8x8x4xf32>
    %25 = vector.shape_cast %24 : vector<2x8x8x4xf32> to vector<128x4xf32>
    %c0_33 = arith.constant 0 : index
    %c2_34 = arith.constant 2 : index
    %c0_35 = arith.constant 0 : index
    %c0_36 = arith.constant 0 : index
    %26 = vector.load %arg8[%c0_33, %c2_34, %c0_35, %c0_36] : memref<2x10x10x4xf32, #tpu.memory_space<vmem>>, vector<2x8x8x4xf32>
    %27 = vector.shape_cast %26 : vector<2x8x8x4xf32> to vector<128x4xf32>
    %c0_37 = arith.constant 0 : index
    %c2_38 = arith.constant 2 : index
    %c1_39 = arith.constant 1 : index
    %c0_40 = arith.constant 0 : index
    %28 = vector.load %arg8[%c0_37, %c2_38, %c1_39, %c0_40] : memref<2x10x10x4xf32, #tpu.memory_space<vmem>>, vector<2x8x8x4xf32>
    %29 = vector.shape_cast %28 : vector<2x8x8x4xf32> to vector<128x4xf32>
    %c0_41 = arith.constant 0 : index
    %c2_42 = arith.constant 2 : index
    %c2_43 = arith.constant 2 : index
    %c0_44 = arith.constant 0 : index
    %30 = vector.load %arg8[%c0_41, %c2_42, %c2_43, %c0_44] : memref<2x10x10x4xf32, #tpu.memory_space<vmem>>, vector<2x8x8x4xf32>
    %31 = vector.shape_cast %30 : vector<2x8x8x4xf32> to vector<128x4xf32>
    %32 = tpu.concatenate %15, %17, %19, %21, %23, %25, %27, %29, %31 in 1 : vector<128x4xf32>, vector<128x4xf32>, vector<128x4xf32>, vector<128x4xf32>, vector<128x4xf32>, vector<128x4xf32>, vector<128x4xf32>, vector<128x4xf32>, vector<128x4xf32> -> vector<128x36xf32>
    %c0_45 = arith.constant 0 : index
    %c0_46 = arith.constant 0 : index
    %33 = vector.load %arg1[%c0_45, %c0_46] : memref<36x8xf32, #tpu.memory_space<vmem>>, vector<36x8xf32>
    %cst_47 = arith.constant dense<0.000000e+00> : vector<128x8xf32>
    %34 = tpu.matmul %32, %33, %cst_47 {dimension_numbers = #tpu.dot_dimension_numbers<[1], [0], [0], [1], [0, 0, 1, 1], [], []>} : vector<128x36xf32>, vector<36x8xf32>, vector<128x8xf32> -> vector<128x8xf32>
    %cst_48 = arith.constant dense<0.000000e+00> : vector<8xf32>
    %35 = vector.multi_reduction <add>, %34, %cst_48 [0] : vector<128x8xf32> to vector<8xf32>
    %36 = vector.shape_cast %35 : vector<8xf32> to vector<1x8xf32>
    %37 = arith.mulf %34, %34 : vector<128x8xf32>
    %cst_49 = arith.constant dense<0.000000e+00> : vector<8xf32>
    %38 = vector.multi_reduction <add>, %37, %cst_49 [0] : vector<128x8xf32> to vector<8xf32>
    %39 = vector.shape_cast %38 : vector<8xf32> to vector<1x8xf32>
    %cst_50 = arith.constant 7.812500e-03 : f32
    %40 = vector.broadcast %cst_50 : f32 to vector<1x8xf32>
    %41 = arith.mulf %36, %40 : vector<1x8xf32>
    %cst_51 = arith.constant 7.812500e-03 : f32
    %42 = vector.broadcast %cst_51 : f32 to vector<1x8xf32>
    %43 = arith.mulf %39, %42 : vector<1x8xf32>
    %44 = arith.mulf %41, %41 : vector<1x8xf32>
    %45 = arith.subf %43, %44 : vector<1x8xf32>
    %46 = vector.broadcast %41 : vector<1x8xf32> to vector<128x8xf32>
    %47 = arith.subf %34, %46 : vector<128x8xf32>
    %cst_52 = arith.constant 9.99999974E-6 : f32
    %48 = vector.broadcast %cst_52 : f32 to vector<1x8xf32>
    %49 = arith.addf %45, %48 : vector<1x8xf32>
    %50 = math.rsqrt %49 : vector<1x8xf32>
    %51 = vector.broadcast %50 : vector<1x8xf32> to vector<128x8xf32>
    %52 = arith.mulf %47, %51 : vector<128x8xf32>
    %c0_53 = arith.constant 0 : index
    %c0_54 = arith.constant 0 : index
    %53 = vector.load %arg2[%c0_53, %c0_54] : memref<1x8xf32, #tpu.memory_space<vmem>>, vector<1x8xf32>
    %54 = vector.broadcast %53 : vector<1x8xf32> to vector<128x8xf32>
    %55 = arith.mulf %52, %54 : vector<128x8xf32>
    %c0_55 = arith.constant 0 : index
    %c0_56 = arith.constant 0 : index
    %56 = vector.load %arg3[%c0_55, %c0_56] : memref<1x8xf32, #tpu.memory_space<vmem>>, vector<1x8xf32>
    %57 = vector.broadcast %56 : vector<1x8xf32> to vector<128x8xf32>
    %58 = arith.addf %55, %57 : vector<128x8xf32>
    %cst_57 = arith.constant 0.000000e+00 : f32
    %59 = vector.broadcast %cst_57 : f32 to vector<128x8xf32>
    %60 = arith.maximumf %58, %59 : vector<128x8xf32>
    %cst_58 = arith.constant 0.000000e+00 : f32
    %61 = vector.broadcast %cst_58 : f32 to vector<2x10x10x8xf32>
    %c0_59 = arith.constant 0 : index
    %c0_60 = arith.constant 0 : index
    %c0_61 = arith.constant 0 : index
    %c0_62 = arith.constant 0 : index
    %62 = vector.load %arg9[%c0_59, %c0_60, %c0_61, %c0_62] : memref<2x10x10x8xf32, #tpu.memory_space<vmem>>, vector<2x10x10x8xf32>
    tpu.vector_store %arg9[%c0_59, %c0_60, %c0_61, %c0_62], %61 {strides = array<i32>} : memref<2x10x10x8xf32, #tpu.memory_space<vmem>>, vector<2x10x10x8xf32>,
    %63 = vector.shape_cast %60 : vector<128x8xf32> to vector<2x8x8x8xf32>
    %c0_63 = arith.constant 0 : index
    %c1_64 = arith.constant 1 : index
    %c1_65 = arith.constant 1 : index
    %c0_66 = arith.constant 0 : index
    %64 = vector.load %arg9[%c0_63, %c1_64, %c1_65, %c0_66] : memref<2x10x10x8xf32, #tpu.memory_space<vmem>>, vector<2x8x8x8xf32>
    tpu.vector_store %arg9[%c0_63, %c1_64, %c1_65, %c0_66], %63 {strides = array<i32>} : memref<2x10x10x8xf32, #tpu.memory_space<vmem>>, vector<2x8x8x8xf32>,
    %c0_67 = arith.constant 0 : index
    %c0_68 = arith.constant 0 : index
    %c0_69 = arith.constant 0 : index
    %c0_70 = arith.constant 0 : index
    %65 = vector.load %arg9[%c0_67, %c0_68, %c0_69, %c0_70] : memref<2x10x10x8xf32, #tpu.memory_space<vmem>>, vector<2x8x8x8xf32>
    %66 = vector.shape_cast %65 : vector<2x8x8x8xf32> to vector<128x8xf32>
    %c0_71 = arith.constant 0 : index
    %c0_72 = arith.constant 0 : index
    %c1_73 = arith.constant 1 : index
    %c0_74 = arith.constant 0 : index
    %67 = vector.load %arg9[%c0_71, %c0_72, %c1_73, %c0_74] : memref<2x10x10x8xf32, #tpu.memory_space<vmem>>, vector<2x8x8x8xf32>
    %68 = vector.shape_cast %67 : vector<2x8x8x8xf32> to vector<128x8xf32>
    %c0_75 = arith.constant 0 : index
    %c0_76 = arith.constant 0 : index
    %c2_77 = arith.constant 2 : index
    %c0_78 = arith.constant 0 : index
    %69 = vector.load %arg9[%c0_75, %c0_76, %c2_77, %c0_78] : memref<2x10x10x8xf32, #tpu.memory_space<vmem>>, vector<2x8x8x8xf32>
    %70 = vector.shape_cast %69 : vector<2x8x8x8xf32> to vector<128x8xf32>
    %c0_79 = arith.constant 0 : index
    %c1_80 = arith.constant 1 : index
    %c0_81 = arith.constant 0 : index
    %c0_82 = arith.constant 0 : index
    %71 = vector.load %arg9[%c0_79, %c1_80, %c0_81, %c0_82] : memref<2x10x10x8xf32, #tpu.memory_space<vmem>>, vector<2x8x8x8xf32>
    %72 = vector.shape_cast %71 : vector<2x8x8x8xf32> to vector<128x8xf32>
    %c0_83 = arith.constant 0 : index
    %c1_84 = arith.constant 1 : index
    %c1_85 = arith.constant 1 : index
    %c0_86 = arith.constant 0 : index
    %73 = vector.load %arg9[%c0_83, %c1_84, %c1_85, %c0_86] : memref<2x10x10x8xf32, #tpu.memory_space<vmem>>, vector<2x8x8x8xf32>
    %74 = vector.shape_cast %73 : vector<2x8x8x8xf32> to vector<128x8xf32>
    %c0_87 = arith.constant 0 : index
    %c1_88 = arith.constant 1 : index
    %c2_89 = arith.constant 2 : index
    %c0_90 = arith.constant 0 : index
    %75 = vector.load %arg9[%c0_87, %c1_88, %c2_89, %c0_90] : memref<2x10x10x8xf32, #tpu.memory_space<vmem>>, vector<2x8x8x8xf32>
    %76 = vector.shape_cast %75 : vector<2x8x8x8xf32> to vector<128x8xf32>
    %c0_91 = arith.constant 0 : index
    %c2_92 = arith.constant 2 : index
    %c0_93 = arith.constant 0 : index
    %c0_94 = arith.constant 0 : index
    %77 = vector.load %arg9[%c0_91, %c2_92, %c0_93, %c0_94] : memref<2x10x10x8xf32, #tpu.memory_space<vmem>>, vector<2x8x8x8xf32>
    %78 = vector.shape_cast %77 : vector<2x8x8x8xf32> to vector<128x8xf32>
    %c0_95 = arith.constant 0 : index
    %c2_96 = arith.constant 2 : index
    %c1_97 = arith.constant 1 : index
    %c0_98 = arith.constant 0 : index
    %79 = vector.load %arg9[%c0_95, %c2_96, %c1_97, %c0_98] : memref<2x10x10x8xf32, #tpu.memory_space<vmem>>, vector<2x8x8x8xf32>
    %80 = vector.shape_cast %79 : vector<2x8x8x8xf32> to vector<128x8xf32>
    %c0_99 = arith.constant 0 : index
    %c2_100 = arith.constant 2 : index
    %c2_101 = arith.constant 2 : index
    %c0_102 = arith.constant 0 : index
    %81 = vector.load %arg9[%c0_99, %c2_100, %c2_101, %c0_102] : memref<2x10x10x8xf32, #tpu.memory_space<vmem>>, vector<2x8x8x8xf32>
    %82 = vector.shape_cast %81 : vector<2x8x8x8xf32> to vector<128x8xf32>
    %83 = tpu.concatenate %66, %68, %70, %72, %74, %76, %78, %80, %82 in 1 : vector<128x8xf32>, vector<128x8xf32>, vector<128x8xf32>, vector<128x8xf32>, vector<128x8xf32>, vector<128x8xf32>, vector<128x8xf32>, vector<128x8xf32>, vector<128x8xf32> -> vector<128x72xf32>
    %c0_103 = arith.constant 0 : index
    %c0_104 = arith.constant 0 : index
    %84 = vector.load %arg4[%c0_103, %c0_104] : memref<72x8xf32, #tpu.memory_space<vmem>>, vector<72x8xf32>
    %cst_105 = arith.constant dense<0.000000e+00> : vector<128x8xf32>
    %85 = tpu.matmul %83, %84, %cst_105 {dimension_numbers = #tpu.dot_dimension_numbers<[1], [0], [0], [1], [0, 0, 1, 1], [], []>} : vector<128x72xf32>, vector<72x8xf32>, vector<128x8xf32> -> vector<128x8xf32>
    %cst_106 = arith.constant dense<0.000000e+00> : vector<8xf32>
    %86 = vector.multi_reduction <add>, %85, %cst_106 [0] : vector<128x8xf32> to vector<8xf32>
    %87 = vector.shape_cast %86 : vector<8xf32> to vector<1x8xf32>
    %88 = arith.mulf %85, %85 : vector<128x8xf32>
    %cst_107 = arith.constant dense<0.000000e+00> : vector<8xf32>
    %89 = vector.multi_reduction <add>, %88, %cst_107 [0] : vector<128x8xf32> to vector<8xf32>
    %90 = vector.shape_cast %89 : vector<8xf32> to vector<1x8xf32>
    %cst_108 = arith.constant 7.812500e-03 : f32
    %91 = vector.broadcast %cst_108 : f32 to vector<1x8xf32>
    %92 = arith.mulf %87, %91 : vector<1x8xf32>
    %cst_109 = arith.constant 7.812500e-03 : f32
    %93 = vector.broadcast %cst_109 : f32 to vector<1x8xf32>
    %94 = arith.mulf %90, %93 : vector<1x8xf32>
    %95 = arith.mulf %92, %92 : vector<1x8xf32>
    %96 = arith.subf %94, %95 : vector<1x8xf32>
    %97 = vector.broadcast %92 : vector<1x8xf32> to vector<128x8xf32>
    %98 = arith.subf %85, %97 : vector<128x8xf32>
    %cst_110 = arith.constant 9.99999974E-6 : f32
    %99 = vector.broadcast %cst_110 : f32 to vector<1x8xf32>
    %100 = arith.addf %96, %99 : vector<1x8xf32>
    %101 = math.rsqrt %100 : vector<1x8xf32>
    %102 = vector.broadcast %101 : vector<1x8xf32> to vector<128x8xf32>
    %103 = arith.mulf %98, %102 : vector<128x8xf32>
    %c0_111 = arith.constant 0 : index
    %c0_112 = arith.constant 0 : index
    %104 = vector.load %arg5[%c0_111, %c0_112] : memref<1x8xf32, #tpu.memory_space<vmem>>, vector<1x8xf32>
    %105 = vector.broadcast %104 : vector<1x8xf32> to vector<128x8xf32>
    %106 = arith.mulf %103, %105 : vector<128x8xf32>
    %c0_113 = arith.constant 0 : index
    %c0_114 = arith.constant 0 : index
    %107 = vector.load %arg6[%c0_113, %c0_114] : memref<1x8xf32, #tpu.memory_space<vmem>>, vector<1x8xf32>
    %108 = vector.broadcast %107 : vector<1x8xf32> to vector<128x8xf32>
    %109 = arith.addf %106, %108 : vector<128x8xf32>
    %cst_115 = arith.constant 0.000000e+00 : f32
    %110 = vector.broadcast %cst_115 : f32 to vector<128x8xf32>
    %111 = arith.maximumf %109, %110 : vector<128x8xf32>
    %112 = tpu.transpose %111, [1, 0] : vector<128x8xf32> -> vector<8x128xf32>
    %c0_116 = arith.constant 0 : index
    %c0_117 = arith.constant 0 : index
    %113 = vector.load %arg7[%c0_116, %c0_117] : memref<8x128xf32, #tpu.memory_space<vmem>>, vector<8x128xf32>
    tpu.vector_store %arg7[%c0_116, %c0_117], %112 {strides = array<i32>} : memref<8x128xf32, #tpu.memory_space<vmem>>, vector<8x128xf32>,
    return
  }
}

</mosaic_0001>

<llo_original>
// kernel: tpu_custom_call.1
$region0: #{tpu_custom_call.1}
  #allocation0 [shape = 'u32[]', space=smem, size = 0x4, offset = 0x4, fixed_abs, tag = 'smem constant byte address 0x4 - core index']
  #allocation1 [shape = 'u32[144,128]{1,0:T(1,128)}', space=vmem, size = 0x12000, scoped, tag = 'internal scratch']
  #allocation2 [shape = 'f32[2,10,10,4]{3,2,1,0:T(8,128)}', space=vmem, size = 0x28000, scoped, tag = 'scratch operand']
  #allocation3 [shape = 'f32[2,10,10,8]{3,2,1,0:T(8,128)}', space=vmem, size = 0x28000, scoped, tag = 'scratch operand']
  %s0 = inlined_call_operand.vmem [shape: f32[2,16,8,8], index: 0, kind: input, shape index: {}]
  %s1 = inlined_call_operand.vmem [shape: f32[36,8], index: 1, kind: input, shape index: {}]
  %s2 = inlined_call_operand.vmem [shape: f32[1,8], index: 2, kind: input, shape index: {}]
  %s3 = inlined_call_operand.vmem [shape: f32[1,8], index: 3, kind: input, shape index: {}]
  %s4 = inlined_call_operand.vmem [shape: f32[72,8], index: 4, kind: input, shape index: {}]
  %s5 = inlined_call_operand.vmem [shape: f32[1,8], index: 5, kind: input, shape index: {}]
  %s6 = inlined_call_operand.vmem [shape: f32[1,8], index: 6, kind: input, shape index: {}]
  %s7 = inlined_call_operand.hbm [shape: f32[8,128], index: 7, kind: output, shape index: {}]
  %s8 = sld [smem:[#allocation0]]
  $region38: #{tpu_custom_call.1} parent=0
    _
  %s10 = ssub.s32 1, %s8
  %s11 = scalar_select 0, %s10, %s8
  $region1: #{tpu_custom_call.1} parent=0
    #allocation4 [shape = 'u8[4096]{0}', space=vmem, size = 0x1000, scoped, tag = 'output window, operand 0, single buffered']
    #allocation5 [shape = 's32[1]{0}', space=sflag, size = 0x4, scoped, tag = 'scoped memory for tpu_custom_call.1']
    %12 = vsyncpa [#allocation5], 0
    // Predicated region
    $region2: #{tpu_custom_call.1} parent=1 // pred_check
      _
    $region3: #{tpu_custom_call.1} parent=1 // pred_check_branch
      %14 = sbr.rel (0) target = $region5
    $region4: #{tpu_custom_call.1} parent=1 // pred_region
      _
    $region5: #{tpu_custom_call.1} parent=1 // pred_fallthru
      _
    // Predicated region
    $region6: #{tpu_custom_call.1} parent=1 // pred_check
      _
    $region7: #{tpu_custom_call.1} parent=1 // pred_check_branch
      %16 = sbr.rel (0) target = $region9
    $region8: #{tpu_custom_call.1} parent=1 // pred_region
      _
    $region9: #{tpu_custom_call.1} parent=1 // pred_fallthru
      _
    // Predicated region
    $region10: #{tpu_custom_call.1} parent=1 // pred_check
      _
    $region11: #{tpu_custom_call.1} parent=1 // pred_check_branch
      %18 = sbr.rel (0) target = $region13
    $region12: #{tpu_custom_call.1} parent=1 // pred_region
      _
    $region13: #{tpu_custom_call.1} parent=1 // pred_fallthru
      _
    // Predicated region
    $region14: #{tpu_custom_call.1} parent=1 // pred_check
      _
    $region15: #{tpu_custom_call.1} parent=1 // pred_check_branch
      %20 = sbr.rel (0) target = $region17
    $region16: #{tpu_custom_call.1} parent=1 // pred_region
      _
    $region17: #{tpu_custom_call.1} parent=1 // pred_fallthru
      _
    // Predicated region
    $region18: #{tpu_custom_call.1} parent=1 // pred_check
      _
    $region19: #{tpu_custom_call.1} parent=1 // pred_check_branch
      %22 = sbr.rel (0) target = $region21
    $region20: #{tpu_custom_call.1} parent=1 // pred_region
      _
    $region21: #{tpu_custom_call.1} parent=1 // pred_fallthru
      _
    // Predicated region
    $region22: #{tpu_custom_call.1} parent=1 // pred_check
      _
    $region23: #{tpu_custom_call.1} parent=1 // pred_check_branch
      %24 = sbr.rel (0) target = $region25
    $region24: #{tpu_custom_call.1} parent=1 // pred_region
      _
    $region25: #{tpu_custom_call.1} parent=1 // pred_fallthru
      _
    // Predicated region
    $region26: #{tpu_custom_call.1} parent=1 // pred_check
      _
    $region27: #{tpu_custom_call.1} parent=1 // pred_check_branch
      %26 = sbr.rel (0) target = $region29
    $region28: #{tpu_custom_call.1} parent=1 // pred_region
      _
    $region29: #{tpu_custom_call.1} parent=1 // pred_fallthru
      _
    %v27 = vld [vmem:[%s0] sm:$0xff]
    %v28 = vld [vmem:[%s0 + $0x8] sm:$0xff]
    %v29 = vld [vmem:[%s0 + $0x10] sm:$0xff]
    %v30 = vld [vmem:[%s0 + $0x18] sm:$0xff]
    %v31 = vld [vmem:[%s0 + $0x20] sm:$0xff]
    %v32 = vld [vmem:[%s0 + $0x28] sm:$0xff]
    %v33 = vld [vmem:[%s0 + $0x30] sm:$0xff]
    %v34 = vld [vmem:[%s0 + $0x38] sm:$0xff]
    %v35 = vld [vmem:[%s0 + $0x40] sm:$0xff]
    %v36 = vld [vmem:[%s0 + $0x48] sm:$0xff]
    %v37 = vld [vmem:[%s0 + $0x50] sm:$0xff]
    %v38 = vld [vmem:[%s0 + $0x58] sm:$0xff]
    %v39 = vld [vmem:[%s0 + $0x60] sm:$0xff]
    %v40 = vld [vmem:[%s0 + $0x68] sm:$0xff]
    %v41 = vld [vmem:[%s0 + $0x70] sm:$0xff]
    %v42 = vld [vmem:[%s0 + $0x78] sm:$0xff]
    %v43 = vld [vmem:[%s0 + $0x80] sm:$0xff]
    %v44 = vld [vmem:[%s0 + $0x88] sm:$0xff]
    %v45 = vld [vmem:[%s0 + $0x90] sm:$0xff]
    %v46 = vld [vmem:[%s0 + $0x98] sm:$0xff]
    %v47 = vld [vmem:[%s0 + $0xa0] sm:$0xff]
    %v48 = vld [vmem:[%s0 + $0xa8] sm:$0xff]
    %v49 = vld [vmem:[%s0 + $0xb0] sm:$0xff]
    %v50 = vld [vmem:[%s0 + $0xb8] sm:$0xff]
    %v51 = vld [vmem:[%s0 + $0xc0] sm:$0xff]
    %v52 = vld [vmem:[%s0 + $0xc8] sm:$0xff]
    %v53 = vld [vmem:[%s0 + $0xd0] sm:$0xff]
    %v54 = vld [vmem:[%s0 + $0xd8] sm:$0xff]
    %v55 = vld [vmem:[%s0 + $0xe0] sm:$0xff]
    %v56 = vld [vmem:[%s0 + $0xe8] sm:$0xff]
    %v57 = vld [vmem:[%s0 + $0xf0] sm:$0xff]
    %v58 = vld [vmem:[%s0 + $0xf8] sm:$0xff]
    %v59 = vmax.f32 %v27, %v28
    %v60 = vmax.f32 %v29, %v30
    %v61 = vmax.f32 %v31, %v32
    %v62 = vmax.f32 %v33, %v34
    %v63 = vmax.f32 %v35, %v36
    %v64 = vmax.f32 %v37, %v38
    %v65 = vmax.f32 %v39, %v40
    %v66 = vmax.f32 %v41, %v42
    %v67 = vmax.f32 %v43, %v44
    %v68 = vmax.f32 %v45, %v46
    %v69 = vmax.f32 %v47, %v48
    %v70 = vmax.f32 %v49, %v50
    %v71 = vmax.f32 %v51, %v52
    %v72 = vmax.f32 %v53, %v54
    %v73 = vmax.f32 %v55, %v56
    %v74 = vmax.f32 %v57, %v58
    %91 = vrot.lane.b32.xlu0 %v59, 124
    %v92 = vpop.permute.xlu0 %91
    %93 = vrot.lane.b32.xlu0 %v60, 124
    %v94 = vpop.permute.xlu0 %93
    %95 = vrot.lane.b32.xlu0 %v61, 124
    %v96 = vpop.permute.xlu0 %95
    %97 = vrot.lane.b32.xlu0 %v62, 124
    %v98 = vpop.permute.xlu0 %97
    %99 = vrot.lane.b32.xlu0 %v63, 124
    %v100 = vpop.permute.xlu0 %99
    %101 = vrot.lane.b32.xlu0 %v64, 124
    %v102 = vpop.permute.xlu0 %101
    %103 = vrot.lane.b32.xlu0 %v65, 124
    %v104 = vpop.permute.xlu0 %103
    %105 = vrot.lane.b32.xlu0 %v66, 124
    %v106 = vpop.permute.xlu0 %105
    %107 = vrot.lane.b32.xlu0 %v67, 124
    %v108 = vpop.permute.xlu0 %107
    %109 = vrot.lane.b32.xlu0 %v68, 124
    %v110 = vpop.permute.xlu0 %109
    %111 = vrot.lane.b32.xlu0 %v69, 124
    %v112 = vpop.permute.xlu0 %111
    %113 = vrot.lane.b32.xlu0 %v70, 124
    %v114 = vpop.permute.xlu0 %113
    %115 = vrot.lane.b32.xlu0 %v71, 124
    %v116 = vpop.permute.xlu0 %115
    %117 = vrot.lane.b32.xlu0 %v72, 124
    %v118 = vpop.permute.xlu0 %117
    %119 = vrot.lane.b32.xlu0 %v73, 124
    %v120 = vpop.permute.xlu0 %119
    %121 = vrot.lane.b32.xlu0 %v74, 124
    %v122 = vpop.permute.xlu0 %121
    %v139 = vmax.f32 %v59, %v92
    %v140 = vmax.f32 %v60, %v94
    %v141 = vmax.f32 %v61, %v96
    %v142 = vmax.f32 %v62, %v98
    %v143 = vmax.f32 %v63, %v100
    %v144 = vmax.f32 %v64, %v102
    %v145 = vmax.f32 %v65, %v104
    %v146 = vmax.f32 %v66, %v106
    %v147 = vmax.f32 %v67, %v108
    %v148 = vmax.f32 %v68, %v110
    %v149 = vmax.f32 %v69, %v112
    %v150 = vmax.f32 %v70, %v114
    %v151 = vmax.f32 %v71, %v116
    %v152 = vmax.f32 %v72, %v118
    %v153 = vmax.f32 %v73, %v120
    %v154 = vmax.f32 %v74, %v122
    %vm155 = vcmask 31744
    %156 = vst.msk [vmem:[#allocation2] sm:$0xff] %vm155, 0.0
    %vm157 = vcmask 25600
    %158 = vst.msk [vmem:[#allocation2 + $0x8] sm:$0x3] %vm157, 0.0
    %159 = vst.msk [vmem:[#allocation2 + $0x10] sm:$0xff] %vm155, 0.0
    %160 = vst.msk [vmem:[#allocation2 + $0x18] sm:$0x3] %vm157, 0.0
    %161 = vst.msk [vmem:[#allocation2 + $0x20] sm:$0xff] %vm155, 0.0
    %162 = vst.msk [vmem:[#allocation2 + $0x28] sm:$0x3] %vm157, 0.0
    %163 = vst.msk [vmem:[#allocation2 + $0x30] sm:$0xff] %vm155, 0.0
    %164 = vst.msk [vmem:[#allocation2 + $0x38] sm:$0x3] %vm157, 0.0
    %165 = vst.msk [vmem:[#allocation2 + $0x40] sm:$0xff] %vm155, 0.0
    %166 = vst.msk [vmem:[#allocation2 + $0x48] sm:$0x3] %vm157, 0.0
    %167 = vst.msk [vmem:[#allocation2 + $0x50] sm:$0xff] %vm155, 0.0
    %168 = vst.msk [vmem:[#allocation2 + $0x58] sm:$0x3] %vm157, 0.0
    %169 = vst.msk [vmem:[#allocation2 + $0x60] sm:$0xff] %vm155, 0.0
    %170 = vst.msk [vmem:[#allocation2 + $0x68] sm:$0x3] %vm157, 0.0
    %171 = vst.msk [vmem:[#allocation2 + $0x70] sm:$0xff] %vm155, 0.0
    %172 = vst.msk [vmem:[#allocation2 + $0x78] sm:$0x3] %vm157, 0.0
    %173 = vst.msk [vmem:[#allocation2 + $0x80] sm:$0xff] %vm155, 0.0
    %174 = vst.msk [vmem:[#allocation2 + $0x88] sm:$0x3] %vm157, 0.0
    %175 = vst.msk [vmem:[#allocation2 + $0x90] sm:$0xff] %vm155, 0.0
    %176 = vst.msk [vmem:[#allocation2 + $0x98] sm:$0x3] %vm157, 0.0
    %177 = vst.msk [vmem:[#allocation2 + $0xa0] sm:$0xff] %vm155, 0.0
    %178 = vst.msk [vmem:[#allocation2 + $0xa8] sm:$0x3] %vm157, 0.0
    %179 = vst.msk [vmem:[#allocation2 + $0xb0] sm:$0xff] %vm155, 0.0
    %180 = vst.msk [vmem:[#allocation2 + $0xb8] sm:$0x3] %vm157, 0.0
    %181 = vst.msk [vmem:[#allocation2 + $0xc0] sm:$0xff] %vm155, 0.0
    %182 = vst.msk [vmem:[#allocation2 + $0xc8] sm:$0x3] %vm157, 0.0
    %183 = vst.msk [vmem:[#allocation2 + $0xd0] sm:$0xff] %vm155, 0.0
    %184 = vst.msk [vmem:[#allocation2 + $0xd8] sm:$0x3] %vm157, 0.0
    %185 = vst.msk [vmem:[#allocation2 + $0xe0] sm:$0xff] %vm155, 0.0
    %186 = vst.msk [vmem:[#allocation2 + $0xe8] sm:$0x3] %vm157, 0.0
    %187 = vst.msk [vmem:[#allocation2 + $0xf0] sm:$0xff] %vm155, 0.0
    %188 = vst.msk [vmem:[#allocation2 + $0xf8] sm:$0x3] %vm157, 0.0
    %189 = vst.msk [vmem:[#allocation2 + $0x100] sm:$0xff] %vm155, 0.0
    %190 = vst.msk [vmem:[#allocation2 + $0x108] sm:$0x3] %vm157, 0.0
    %191 = vst.msk [vmem:[#allocation2 + $0x110] sm:$0xff] %vm155, 0.0
    %192 = vst.msk [vmem:[#allocation2 + $0x118] sm:$0x3] %vm157, 0.0
    %193 = vst.msk [vmem:[#allocation2 + $0x120] sm:$0xff] %vm155, 0.0
    %194 = vst.msk [vmem:[#allocation2 + $0x128] sm:$0x3] %vm157, 0.0
    %195 = vst.msk [vmem:[#allocation2 + $0x130] sm:$0xff] %vm155, 0.0
    %196 = vst.msk [vmem:[#allocation2 + $0x138] sm:$0x3] %vm157, 0.0
    %s197 = scalar_lea.vmem [#allocation2], 16
    %198 = vst.msk [vmem:[%s197 + $0x1] sm:$0xff] %vm155, %v139
    %199 = vst.msk [vmem:[%s197 + $0x11] sm:$0xff] %vm155, %v140
    %200 = vst.msk [vmem:[%s197 + $0x21] sm:$0xff] %vm155, %v141
    %201 = vst.msk [vmem:[%s197 + $0x31] sm:$0xff] %vm155, %v142
    %202 = vst.msk [vmem:[%s197 + $0x41] sm:$0xff] %vm155, %v143
    %203 = vst.msk [vmem:[%s197 + $0x51] sm:$0xff] %vm155, %v144
    %204 = vst.msk [vmem:[%s197 + $0x61] sm:$0xff] %vm155, %v145
    %205 = vst.msk [vmem:[%s197 + $0x71] sm:$0xff] %vm155, %v146
    %206 = vst.msk [vmem:[%s197 + $0xa1] sm:$0xff] %vm155, %v147
    %207 = vst.msk [vmem:[%s197 + $0xb1] sm:$0xff] %vm155, %v148
    %208 = vst.msk [vmem:[%s197 + $0xc1] sm:$0xff] %vm155, %v149
    %209 = vst.msk [vmem:[%s197 + $0xd1] sm:$0xff] %vm155, %v150
    %210 = vst.msk [vmem:[%s197 + $0xe1] sm:$0xff] %vm155, %v151
    %211 = vst.msk [vmem:[%s197 + $0xf1] sm:$0xff] %vm155, %v152
    %212 = vst.msk [vmem:[%s197 + $0x101] sm:$0xff] %vm155, %v153
    %213 = vst.msk [vmem:[%s197 + $0x111] sm:$0xff] %vm155, %v154
    %v214 = vld [vmem:[#allocation2] sm:$0xff]
    %v215 = vld [vmem:[#allocation2 + $0x10] sm:$0xff]
    %v216 = vld [vmem:[#allocation2 + $0x20] sm:$0xff]
    %v217 = vld [vmem:[#allocation2 + $0x30] sm:$0xff]
    %v218 = vld [vmem:[#allocation2 + $0x40] sm:$0xff]
    %v219 = vld [vmem:[#allocation2 + $0x50] sm:$0xff]
    %v220 = vld [vmem:[#allocation2 + $0x60] sm:$0xff]
    %v221 = vld [vmem:[#allocation2 + $0x70] sm:$0xff]
    %v222 = vld [vmem:[#allocation2 + $0xa0] sm:$0xff]
    %v223 = vld [vmem:[#allocation2 + $0xb0] sm:$0xff]
    %v224 = vld [vmem:[#allocation2 + $0xc0] sm:$0xff]
    %v225 = vld [vmem:[#allocation2 + $0xd0] sm:$0xff]
    %v226 = vld [vmem:[#allocation2 + $0xe0] sm:$0xff]
    %v227 = vld [vmem:[#allocation2 + $0xf0] sm:$0xff]
    %v228 = vld [vmem:[#allocation2 + $0x100] sm:$0xff]
    %v229 = vld [vmem:[#allocation2 + $0x110] sm:$0xff]
    %v230 = vld [vmem:[#allocation2 + $0x1] sm:$0xff]
    %v231 = vld [vmem:[#allocation2 + $0x11] sm:$0xff]
    %v232 = vld [vmem:[#allocation2 + $0x21] sm:$0xff]
    %v233 = vld [vmem:[#allocation2 + $0x31] sm:$0xff]
    %v234 = vld [vmem:[#allocation2 + $0x41] sm:$0xff]
    %v235 = vld [vmem:[#allocation2 + $0x51] sm:$0xff]
    %v236 = vld [vmem:[#allocation2 + $0x61] sm:$0xff]
    %v237 = vld [vmem:[#allocation2 + $0x71] sm:$0xff]
    %v238 = vld [vmem:[#allocation2 + $0xa1] sm:$0xff]
    %v239 = vld [vmem:[#allocation2 + $0xb1] sm:$0xff]
    %v240 = vld [vmem:[#allocation2 + $0xc1] sm:$0xff]
    %v241 = vld [vmem:[#allocation2 + $0xd1] sm:$0xff]
    %v242 = vld [vmem:[#allocation2 + $0xe1] sm:$0xff]
    %v243 = vld [vmem:[#allocation2 + $0xf1] sm:$0xff]
    %v244 = vld [vmem:[#allocation2 + $0x101] sm:$0xff]
    %v245 = vld [vmem:[#allocation2 + $0x111] sm:$0xff]
    %v246 = vld [vmem:[#allocation2 + $0x2] sm:$0xff]
    %v247 = vld [vmem:[#allocation2 + $0x12] sm:$0xff]
    %v248 = vld [vmem:[#allocation2 + $0x22] sm:$0xff]
    %v249 = vld [vmem:[#allocation2 + $0x32] sm:$0xff]
    %v250 = vld [vmem:[#allocation2 + $0x42] sm:$0xff]
    %v251 = vld [vmem:[#allocation2 + $0x52] sm:$0xff]
    %v252 = vld [vmem:[#allocation2 + $0x62] sm:$0xff]
    %v253 = vld [vmem:[#allocation2 + $0x72] sm:$0xff]
    %v254 = vld [vmem:[#allocation2 + $0xa2] sm:$0xff]
    %v255 = vld [vmem:[#allocation2 + $0xb2] sm:$0xff]
    %v256 = vld [vmem:[#allocation2 + $0xc2] sm:$0xff]
    %v257 = vld [vmem:[#allocation2 + $0xd2] sm:$0xff]
    %v258 = vld [vmem:[#allocation2 + $0xe2] sm:$0xff]
    %v259 = vld [vmem:[#allocation2 + $0xf2] sm:$0xff]
    %v260 = vld [vmem:[#allocation2 + $0x102] sm:$0xff]
    %v261 = vld [vmem:[#allocation2 + $0x112] sm:$0xff]
    %v262 = vld [vmem:[%s197] sm:$0xff]
    %v263 = vld [vmem:[%s197 + $0x10] sm:$0xff]
    %v264 = vld [vmem:[%s197 + $0x20] sm:$0xff]
    %v265 = vld [vmem:[%s197 + $0x30] sm:$0xff]
    %v266 = vld [vmem:[%s197 + $0x40] sm:$0xff]
    %v267 = vld [vmem:[%s197 + $0x50] sm:$0xff]
    %v268 = vld [vmem:[%s197 + $0x60] sm:$0xff]
    %v269 = vld [vmem:[%s197 + $0x70] sm:$0xff]
    %v270 = vld [vmem:[%s197 + $0xa0] sm:$0xff]
    %v271 = vld [vmem:[%s197 + $0xb0] sm:$0xff]
    %v272 = vld [vmem:[%s197 + $0xc0] sm:$0xff]
    %v273 = vld [vmem:[%s197 + $0xd0] sm:$0xff]
    %v274 = vld [vmem:[%s197 + $0xe0] sm:$0xff]
    %v275 = vld [vmem:[%s197 + $0xf0] sm:$0xff]
    %v276 = vld [vmem:[%s197 + $0x100] sm:$0xff]
    %v277 = vld [vmem:[%s197 + $0x110] sm:$0xff]
    %v278 = vld [vmem:[%s197 + $0x1] sm:$0xff]
    %v279 = vld [vmem:[%s197 + $0x11] sm:$0xff]
    %v280 = vld [vmem:[%s197 + $0x21] sm:$0xff]
    %v281 = vld [vmem:[%s197 + $0x31] sm:$0xff]
    %v282 = vld [vmem:[%s197 + $0x41] sm:$0xff]
    %v283 = vld [vmem:[%s197 + $0x51] sm:$0xff]
    %v284 = vld [vmem:[%s197 + $0x61] sm:$0xff]
    %v285 = vld [vmem:[%s197 + $0x71] sm:$0xff]
    %v286 = vld [vmem:[%s197 + $0xa1] sm:$0xff]
    %v287 = vld [vmem:[%s197 + $0xb1] sm:$0xff]
    %v288 = vld [vmem:[%s197 + $0xc1] sm:$0xff]
    %v289 = vld [vmem:[%s197 + $0xd1] sm:$0xff]
    %v290 = vld [vmem:[%s197 + $0xe1] sm:$0xff]
    %v291 = vld [vmem:[%s197 + $0xf1] sm:$0xff]
    %v292 = vld [vmem:[%s197 + $0x101] sm:$0xff]
    %v293 = vld [vmem:[%s197 + $0x111] sm:$0xff]
    %v294 = vld [vmem:[%s197 + $0x2] sm:$0xff]
    %v295 = vld [vmem:[%s197 + $0x12] sm:$0xff]
    %v296 = vld [vmem:[%s197 + $0x22] sm:$0xff]
    %v297 = vld [vmem:[%s197 + $0x32] sm:$0xff]
    %v298 = vld [vmem:[%s197 + $0x42] sm:$0xff]
    %v299 = vld [vmem:[%s197 + $0x52] sm:$0xff]
    %v300 = vld [vmem:[%s197 + $0x62] sm:$0xff]
    %v301 = vld [vmem:[%s197 + $0x72] sm:$0xff]
    %v302 = vld [vmem:[%s197 + $0xa2] sm:$0xff]
    %v303 = vld [vmem:[%s197 + $0xb2] sm:$0xff]
    %v304 = vld [vmem:[%s197 + $0xc2] sm:$0xff]
    %v305 = vld [vmem:[%s197 + $0xd2] sm:$0xff]
    %v306 = vld [vmem:[%s197 + $0xe2] sm:$0xff]
    %v307 = vld [vmem:[%s197 + $0xf2] sm:$0xff]
    %v308 = vld [vmem:[%s197 + $0x102] sm:$0xff]
    %v309 = vld [vmem:[%s197 + $0x112] sm:$0xff]
    %s310 = scalar_lea.vmem [#allocation2], 32
    %v311 = vld [vmem:[%s310] sm:$0xff]
    %v312 = vld [vmem:[%s310 + $0x10] sm:$0xff]
    %v313 = vld [vmem:[%s310 + $0x20] sm:$0xff]
    %v314 = vld [vmem:[%s310 + $0x30] sm:$0xff]
    %v315 = vld [vmem:[%s310 + $0x40] sm:$0xff]
    %v316 = vld [vmem:[%s310 + $0x50] sm:$0xff]
    %v317 = vld [vmem:[%s310 + $0x60] sm:$0xff]
    %v318 = vld [vmem:[%s310 + $0x70] sm:$0xff]
    %v319 = vld [vmem:[%s310 + $0xa0] sm:$0xff]
    %v320 = vld [vmem:[%s310 + $0xb0] sm:$0xff]
    %v321 = vld [vmem:[%s310 + $0xc0] sm:$0xff]
    %v322 = vld [vmem:[%s310 + $0xd0] sm:$0xff]
    %v323 = vld [vmem:[%s310 + $0xe0] sm:$0xff]
    %v324 = vld [vmem:[%s310 + $0xf0] sm:$0xff]
    %v325 = vld [vmem:[%s310 + $0x100] sm:$0xff]
    %v326 = vld [vmem:[%s310 + $0x110] sm:$0xff]
    %v327 = vld [vmem:[%s310 + $0x1] sm:$0xff]
    %v328 = vld [vmem:[%s310 + $0x11] sm:$0xff]
    %v329 = vld [vmem:[%s310 + $0x21] sm:$0xff]
    %v330 = vld [vmem:[%s310 + $0x31] sm:$0xff]
    %v331 = vld [vmem:[%s310 + $0x41] sm:$0xff]
    %v332 = vld [vmem:[%s310 + $0x51] sm:$0xff]
    %v333 = vld [vmem:[%s310 + $0x61] sm:$0xff]
    %v334 = vld [vmem:[%s310 + $0x71] sm:$0xff]
    %v335 = vld [vmem:[%s310 + $0xa1] sm:$0xff]
    %v336 = vld [vmem:[%s310 + $0xb1] sm:$0xff]
    %v337 = vld [vmem:[%s310 + $0xc1] sm:$0xff]
    %v338 = vld [vmem:[%s310 + $0xd1] sm:$0xff]
    %v339 = vld [vmem:[%s310 + $0xe1] sm:$0xff]
    %v340 = vld [vmem:[%s310 + $0xf1] sm:$0xff]
    %v341 = vld [vmem:[%s310 + $0x101] sm:$0xff]
    %v342 = vld [vmem:[%s310 + $0x111] sm:$0xff]
    %v343 = vld [vmem:[%s310 + $0x2] sm:$0xff]
    %v344 = vld [vmem:[%s310 + $0x12] sm:$0xff]
    %v345 = vld [vmem:[%s310 + $0x22] sm:$0xff]
    %v346 = vld [vmem:[%s310 + $0x32] sm:$0xff]
    %v347 = vld [vmem:[%s310 + $0x42] sm:$0xff]
    %v348 = vld [vmem:[%s310 + $0x52] sm:$0xff]
    %v349 = vld [vmem:[%s310 + $0x62] sm:$0xff]
    %v350 = vld [vmem:[%s310 + $0x72] sm:$0xff]
    %v351 = vld [vmem:[%s310 + $0xa2] sm:$0xff]
    %v352 = vld [vmem:[%s310 + $0xb2] sm:$0xff]
    %v353 = vld [vmem:[%s310 + $0xc2] sm:$0xff]
    %v354 = vld [vmem:[%s310 + $0xd2] sm:$0xff]
    %v355 = vld [vmem:[%s310 + $0xe2] sm:$0xff]
    %v356 = vld [vmem:[%s310 + $0xf2] sm:$0xff]
    %v357 = vld [vmem:[%s310 + $0x102] sm:$0xff]
    %v358 = vld [vmem:[%s310 + $0x112] sm:$0xff]
    %375 = vrot.lane.b32.xlu0 %v230, 4
    %v376 = vpop.permute.xlu0 %375
    %377 = vrot.lane.b32.xlu0 %v231, 4
    %v378 = vpop.permute.xlu0 %377
    %379 = vrot.lane.b32.xlu0 %v232, 4
    %v380 = vpop.permute.xlu0 %379
    %381 = vrot.lane.b32.xlu0 %v233, 4
    %v382 = vpop.permute.xlu0 %381
    %383 = vrot.lane.b32.xlu0 %v234, 4
    %v384 = vpop.permute.xlu0 %383
    %385 = vrot.lane.b32.xlu0 %v235, 4
    %v386 = vpop.permute.xlu0 %385
    %387 = vrot.lane.b32.xlu0 %v236, 4
    %v388 = vpop.permute.xlu0 %387
    %389 = vrot.lane.b32.xlu0 %v237, 4
    %v390 = vpop.permute.xlu0 %389
    %391 = vrot.lane.b32.xlu0 %v238, 4
    %v392 = vpop.permute.xlu0 %391
    %393 = vrot.lane.b32.xlu0 %v239, 4
    %v394 = vpop.permute.xlu0 %393
    %395 = vrot.lane.b32.xlu0 %v240, 4
    %v396 = vpop.permute.xlu0 %395
    %397 = vrot.lane.b32.xlu0 %v241, 4
    %v398 = vpop.permute.xlu0 %397
    %399 = vrot.lane.b32.xlu0 %v242, 4
    %v400 = vpop.permute.xlu0 %399
    %401 = vrot.lane.b32.xlu0 %v243, 4
    %v402 = vpop.permute.xlu0 %401
    %403 = vrot.lane.b32.xlu0 %v244, 4
    %v404 = vpop.permute.xlu0 %403
    %405 = vrot.lane.b32.xlu0 %v245, 4
    %v406 = vpop.permute.xlu0 %405
    %439 = vrot.lane.b32.xlu0 %v246, 8
    %v440 = vpop.permute.xlu0 %439
    %441 = vrot.lane.b32.xlu0 %v247, 8
    %v442 = vpop.permute.xlu0 %441
    %443 = vrot.lane.b32.xlu0 %v248, 8
    %v444 = vpop.permute.xlu0 %443
    %445 = vrot.lane.b32.xlu0 %v249, 8
    %v446 = vpop.permute.xlu0 %445
    %447 = vrot.lane.b32.xlu0 %v250, 8
    %v448 = vpop.permute.xlu0 %447
    %449 = vrot.lane.b32.xlu0 %v251, 8
    %v450 = vpop.permute.xlu0 %449
    %451 = vrot.lane.b32.xlu0 %v252, 8
    %v452 = vpop.permute.xlu0 %451
    %453 = vrot.lane.b32.xlu0 %v253, 8
    %v454 = vpop.permute.xlu0 %453
    %455 = vrot.lane.b32.xlu0 %v254, 8
    %v456 = vpop.permute.xlu0 %455
    %457 = vrot.lane.b32.xlu0 %v255, 8
    %v458 = vpop.permute.xlu0 %457
    %459 = vrot.lane.b32.xlu0 %v256, 8
    %v460 = vpop.permute.xlu0 %459
    %461 = vrot.lane.b32.xlu0 %v257, 8
    %v462 = vpop.permute.xlu0 %461
    %463 = vrot.lane.b32.xlu0 %v258, 8
    %v464 = vpop.permute.xlu0 %463
    %465 = vrot.lane.b32.xlu0 %v259, 8
    %v466 = vpop.permute.xlu0 %465
    %467 = vrot.lane.b32.xlu0 %v260, 8
    %v468 = vpop.permute.xlu0 %467
    %469 = vrot.lane.b32.xlu0 %v261, 8
    %v470 = vpop.permute.xlu0 %469
    %503 = vrot.lane.b32.xlu0 %v262, 12
    %v504 = vpop.permute.xlu0 %503
    %505 = vrot.lane.b32.xlu0 %v263, 12
    %v506 = vpop.permute.xlu0 %505
    %507 = vrot.lane.b32.xlu0 %v264, 12
    %v508 = vpop.permute.xlu0 %507
    %509 = vrot.lane.b32.xlu0 %v265, 12
    %v510 = vpop.permute.xlu0 %509
    %511 = vrot.lane.b32.xlu0 %v266, 12
    %v512 = vpop.permute.xlu0 %511
    %513 = vrot.lane.b32.xlu0 %v267, 12
    %v514 = vpop.permute.xlu0 %513
    %515 = vrot.lane.b32.xlu0 %v268, 12
    %v516 = vpop.permute.xlu0 %515
    %517 = vrot.lane.b32.xlu0 %v269, 12
    %v518 = vpop.permute.xlu0 %517
    %519 = vrot.lane.b32.xlu0 %v270, 12
    %v520 = vpop.permute.xlu0 %519
    %521 = vrot.lane.b32.xlu0 %v271, 12
    %v522 = vpop.permute.xlu0 %521
    %523 = vrot.lane.b32.xlu0 %v272, 12
    %v524 = vpop.permute.xlu0 %523
    %525 = vrot.lane.b32.xlu0 %v273, 12
    %v526 = vpop.permute.xlu0 %525
    %527 = vrot.lane.b32.xlu0 %v274, 12
    %v528 = vpop.permute.xlu0 %527
    %529 = vrot.lane.b32.xlu0 %v275, 12
    %v530 = vpop.permute.xlu0 %529
    %531 = vrot.lane.b32.xlu0 %v276, 12
    %v532 = vpop.permute.xlu0 %531
    %533 = vrot.lane.b32.xlu0 %v277, 12
    %v534 = vpop.permute.xlu0 %533
    %567 = vrot.lane.b32.xlu0 %v278, 16
    %v568 = vpop.permute.xlu0 %567
    %569 = vrot.lane.b32.xlu0 %v279, 16
    %v570 = vpop.permute.xlu0 %569
    %571 = vrot.lane.b32.xlu0 %v280, 16
    %v572 = vpop.permute.xlu0 %571
    %573 = vrot.lane.b32.xlu0 %v281, 16
    %v574 = vpop.permute.xlu0 %573
    %575 = vrot.lane.b32.xlu0 %v282, 16
    %v576 = vpop.permute.xlu0 %575
    %577 = vrot.lane.b32.xlu0 %v283, 16
    %v578 = vpop.permute.xlu0 %577
    %579 = vrot.lane.b32.xlu0 %v284, 16
    %v580 = vpop.permute.xlu0 %579
    %581 = vrot.lane.b32.xlu0 %v285, 16
    %v582 = vpop.permute.xlu0 %581
    %583 = vrot.lane.b32.xlu0 %v286, 16
    %v584 = vpop.permute.xlu0 %583
    %585 = vrot.lane.b32.xlu0 %v287, 16
    %v586 = vpop.permute.xlu0 %585
    %587 = vrot.lane.b32.xlu0 %v288, 16
    %v588 = vpop.permute.xlu0 %587
    %589 = vrot.lane.b32.xlu0 %v289, 16
    %v590 = vpop.permute.xlu0 %589
    %591 = vrot.lane.b32.xlu0 %v290, 16
    %v592 = vpop.permute.xlu0 %591
    %593 = vrot.lane.b32.xlu0 %v291, 16
    %v594 = vpop.permute.xlu0 %593
    %595 = vrot.lane.b32.xlu0 %v292, 16
    %v596 = vpop.permute.xlu0 %595
    %597 = vrot.lane.b32.xlu0 %v293, 16
    %v598 = vpop.permute.xlu0 %597
    %631 = vrot.lane.b32.xlu0 %v294, 20
    %v632 = vpop.permute.xlu0 %631
    %633 = vrot.lane.b32.xlu0 %v295, 20
    %v634 = vpop.permute.xlu0 %633
    %635 = vrot.lane.b32.xlu0 %v296, 20
    %v636 = vpop.permute.xlu0 %635
    %637 = vrot.lane.b32.xlu0 %v297, 20
    %v638 = vpop.permute.xlu0 %637
    %639 = vrot.lane.b32.xlu0 %v298, 20
    %v640 = vpop.permute.xlu0 %639
    %641 = vrot.lane.b32.xlu0 %v299, 20
    %v642 = vpop.permute.xlu0 %641
    %643 = vrot.lane.b32.xlu0 %v300, 20
    %v644 = vpop.permute.xlu0 %643
    %645 = vrot.lane.b32.xlu0 %v301, 20
    %v646 = vpop.permute.xlu0 %645
    %647 = vrot.lane.b32.xlu0 %v302, 20
    %v648 = vpop.permute.xlu0 %647
    %649 = vrot.lane.b32.xlu0 %v303, 20
    %v650 = vpop.permute.xlu0 %649
    %651 = vrot.lane.b32.xlu0 %v304, 20
    %v652 = vpop.permute.xlu0 %651
    %653 = vrot.lane.b32.xlu0 %v305, 20
    %v654 = vpop.permute.xlu0 %653
    %655 = vrot.lane.b32.xlu0 %v306, 20
    %v656 = vpop.permute.xlu0 %655
    %657 = vrot.lane.b32.xlu0 %v307, 20
    %v658 = vpop.permute.xlu0 %657
    %659 = vrot.lane.b32.xlu0 %v308, 20
    %v660 = vpop.permute.xlu0 %659
    %661 = vrot.lane.b32.xlu0 %v309, 20
    %v662 = vpop.permute.xlu0 %661
    %695 = vrot.lane.b32.xlu0 %v311, 24
    %v696 = vpop.permute.xlu0 %695
    %697 = vrot.lane.b32.xlu0 %v312, 24
    %v698 = vpop.permute.xlu0 %697
    %699 = vrot.lane.b32.xlu0 %v313, 24
    %v700 = vpop.permute.xlu0 %699
    %701 = vrot.lane.b32.xlu0 %v314, 24
    %v702 = vpop.permute.xlu0 %701
    %703 = vrot.lane.b32.xlu0 %v315, 24
    %v704 = vpop.permute.xlu0 %703
    %705 = vrot.lane.b32.xlu0 %v316, 24
    %v706 = vpop.permute.xlu0 %705
    %707 = vrot.lane.b32.xlu0 %v317, 24
    %v708 = vpop.permute.xlu0 %707
    %709 = vrot.lane.b32.xlu0 %v318, 24
    %v710 = vpop.permute.xlu0 %709
    %711 = vrot.lane.b32.xlu0 %v319, 24
    %v712 = vpop.permute.xlu0 %711
    %713 = vrot.lane.b32.xlu0 %v320, 24
    %v714 = vpop.permute.xlu0 %713
    %715 = vrot.lane.b32.xlu0 %v321, 24
    %v716 = vpop.permute.xlu0 %715
    %717 = vrot.lane.b32.xlu0 %v322, 24
    %v718 = vpop.permute.xlu0 %717
    %719 = vrot.lane.b32.xlu0 %v323, 24
    %v720 = vpop.permute.xlu0 %719
    %721 = vrot.lane.b32.xlu0 %v324, 24
    %v722 = vpop.permute.xlu0 %721
    %723 = vrot.lane.b32.xlu0 %v325, 24
    %v724 = vpop.permute.xlu0 %723
    %725 = vrot.lane.b32.xlu0 %v326, 24
    %v726 = vpop.permute.xlu0 %725
    %759 = vrot.lane.b32.xlu0 %v327, 28
    %v760 = vpop.permute.xlu0 %759
    %761 = vrot.lane.b32.xlu0 %v328, 28
    %v762 = vpop.permute.xlu0 %761
    %763 = vrot.lane.b32.xlu0 %v329, 28
    %v764 = vpop.permute.xlu0 %763
    %765 = vrot.lane.b32.xlu0 %v330, 28
    %v766 = vpop.permute.xlu0 %765
    %767 = vrot.lane.b32.xlu0 %v331, 28
    %v768 = vpop.permute.xlu0 %767
    %769 = vrot.lane.b32.xlu0 %v332, 28
    %v770 = vpop.permute.xlu0 %769
    %771 = vrot.lane.b32.xlu0 %v333, 28
    %v772 = vpop.permute.xlu0 %771
    %773 = vrot.lane.b32.xlu0 %v334, 28
    %v774 = vpop.permute.xlu0 %773
    %775 = vrot.lane.b32.xlu0 %v335, 28
    %v776 = vpop.permute.xlu0 %775
    %777 = vrot.lane.b32.xlu0 %v336, 28
    %v778 = vpop.permute.xlu0 %777
    %779 = vrot.lane.b32.xlu0 %v337, 28
    %v780 = vpop.permute.xlu0 %779
    %781 = vrot.lane.b32.xlu0 %v338, 28
    %v782 = vpop.permute.xlu0 %781
    %783 = vrot.lane.b32.xlu0 %v339, 28
    %v784 = vpop.permute.xlu0 %783
    %785 = vrot.lane.b32.xlu0 %v340, 28
    %v786 = vpop.permute.xlu0 %785
    %787 = vrot.lane.b32.xlu0 %v341, 28
    %v788 = vpop.permute.xlu0 %787
    %789 = vrot.lane.b32.xlu0 %v342, 28
    %v790 = vpop.permute.xlu0 %789
    %823 = vrot.lane.b32.xlu0 %v343, 32
    %v824 = vpop.permute.xlu0 %823
    %825 = vrot.lane.b32.xlu0 %v344, 32
    %v826 = vpop.permute.xlu0 %825
    %827 = vrot.lane.b32.xlu0 %v345, 32
    %v828 = vpop.permute.xlu0 %827
    %829 = vrot.lane.b32.xlu0 %v346, 32
    %v830 = vpop.permute.xlu0 %829
    %831 = vrot.lane.b32.xlu0 %v347, 32
    %v832 = vpop.permute.xlu0 %831
    %833 = vrot.lane.b32.xlu0 %v348, 32
    %v834 = vpop.permute.xlu0 %833
    %835 = vrot.lane.b32.xlu0 %v349, 32
    %v836 = vpop.permute.xlu0 %835
    %837 = vrot.lane.b32.xlu0 %v350, 32
    %v838 = vpop.permute.xlu0 %837
    %839 = vrot.lane.b32.xlu0 %v351, 32
    %v840 = vpop.permute.xlu0 %839
    %841 = vrot.lane.b32.xlu0 %v352, 32
    %v842 = vpop.permute.xlu0 %841
    %843 = vrot.lane.b32.xlu0 %v353, 32
    %v844 = vpop.permute.xlu0 %843
    %845 = vrot.lane.b32.xlu0 %v354, 32
    %v846 = vpop.permute.xlu0 %845
    %847 = vrot.lane.b32.xlu0 %v355, 32
    %v848 = vpop.permute.xlu0 %847
    %849 = vrot.lane.b32.xlu0 %v356, 32
    %v850 = vpop.permute.xlu0 %849
    %851 = vrot.lane.b32.xlu0 %v357, 32
    %v852 = vpop.permute.xlu0 %851
    %853 = vrot.lane.b32.xlu0 %v358, 32
    %v854 = vpop.permute.xlu0 %853
    %v871 = vsel %vm155, %v214, %v376
    %v872 = vsel %vm155, %v215, %v378
    %v873 = vsel %vm155, %v216, %v380
    %v874 = vsel %vm155, %v217, %v382
    %v875 = vsel %vm155, %v218, %v384
    %v876 = vsel %vm155, %v219, %v386
    %v877 = vsel %vm155, %v220, %v388
    %v878 = vsel %vm155, %v221, %v390
    %v879 = vsel %vm155, %v222, %v392
    %v880 = vsel %vm155, %v223, %v394
    %v881 = vsel %vm155, %v224, %v396
    %v882 = vsel %vm155, %v225, %v398
    %v883 = vsel %vm155, %v226, %v400
    %v884 = vsel %vm155, %v227, %v402
    %v885 = vsel %vm155, %v228, %v404
    %v886 = vsel %vm155, %v229, %v406
    %vm887 = vcmask 64512
    %v888 = vsel %vm887, %v871, %v440
    %v889 = vsel %vm887, %v872, %v442
    %v890 = vsel %vm887, %v873, %v444
    %v891 = vsel %vm887, %v874, %v446
    %v892 = vsel %vm887, %v875, %v448
    %v893 = vsel %vm887, %v876, %v450
    %v894 = vsel %vm887, %v877, %v452
    %v895 = vsel %vm887, %v878, %v454
    %v896 = vsel %vm887, %v879, %v456
    %v897 = vsel %vm887, %v880, %v458
    %v898 = vsel %vm887, %v881, %v460
    %v899 = vsel %vm887, %v882, %v462
    %v900 = vsel %vm887, %v883, %v464
    %v901 = vsel %vm887, %v884, %v466
    %v902 = vsel %vm887, %v885, %v468
    %v903 = vsel %vm887, %v886, %v470
    %vm904 = vcmask 97280
    %v905 = vsel %vm904, %v888, %v504
    %v906 = vsel %vm904, %v889, %v506
    %v907 = vsel %vm904, %v890, %v508
    %v908 = vsel %vm904, %v891, %v510
    %v909 = vsel %vm904, %v892, %v512
    %v910 = vsel %vm904, %v893, %v514
    %v911 = vsel %vm904, %v894, %v516
    %v912 = vsel %vm904, %v895, %v518
    %v913 = vsel %vm904, %v896, %v520
    %v914 = vsel %vm904, %v897, %v522
    %v915 = vsel %vm904, %v898, %v524
    %v916 = vsel %vm904, %v899, %v526
    %v917 = vsel %vm904, %v900, %v528
    %v918 = vsel %vm904, %v901, %v530
    %v919 = vsel %vm904, %v902, %v532
    %v920 = vsel %vm904, %v903, %v534
    %vm921 = vcmask 130048
    %v922 = vsel %vm921, %v905, %v568
    %v923 = vsel %vm921, %v906, %v570
    %v924 = vsel %vm921, %v907, %v572
    %v925 = vsel %vm921, %v908, %v574
    %v926 = vsel %vm921, %v909, %v576
    %v927 = vsel %vm921, %v910, %v578
    %v928 = vsel %vm921, %v911, %v580
    %v929 = vsel %vm921, %v912, %v582
    %v930 = vsel %vm921, %v913, %v584
    %v931 = vsel %vm921, %v914, %v586
    %v932 = vsel %vm921, %v915, %v588
    %v933 = vsel %vm921, %v916, %v590
    %v934 = vsel %vm921, %v917, %v592
    %v935 = vsel %vm921, %v918, %v594
    %v936 = vsel %vm921, %v919, %v596
    %v937 = vsel %vm921, %v920, %v598
    %vm938 = vcmask 162816
    %v939 = vsel %vm938, %v922, %v632
    %v940 = vsel %vm938, %v923, %v634
    %v941 = vsel %vm938, %v924, %v636
    %v942 = vsel %vm938, %v925, %v638
    %v943 = vsel %vm938, %v926, %v640
    %v944 = vsel %vm938, %v927, %v642
    %v945 = vsel %vm938, %v928, %v644
    %v946 = vsel %vm938, %v929, %v646
    %v947 = vsel %vm938, %v930, %v648
    %v948 = vsel %vm938, %v931, %v650
    %v949 = vsel %vm938, %v932, %v652
    %v950 = vsel %vm938, %v933, %v654
    %v951 = vsel %vm938, %v934, %v656
    %v952 = vsel %vm938, %v935, %v658
    %v953 = vsel %vm938, %v936, %v660
    %v954 = vsel %vm938, %v937, %v662
    %vm955 = vcmask 195584
    %v956 = vsel %vm955, %v939, %v696
    %v957 = vsel %vm955, %v940, %v698
    %v958 = vsel %vm955, %v941, %v700
    %v959 = vsel %vm955, %v942, %v702
    %v960 = vsel %vm955, %v943, %v704
    %v961 = vsel %vm955, %v944, %v706
    %v962 = vsel %vm955, %v945, %v708
    %v963 = vsel %vm955, %v946, %v710
    %v964 = vsel %vm955, %v947, %v712
    %v965 = vsel %vm955, %v948, %v714
    %v966 = vsel %vm955, %v949, %v716
    %v967 = vsel %vm955, %v950, %v718
    %v968 = vsel %vm955, %v951, %v720
    %v969 = vsel %vm955, %v952, %v722
    %v970 = vsel %vm955, %v953, %v724
    %v971 = vsel %vm955, %v954, %v726
    %vm972 = vcmask 228352
    %v973 = vsel %vm972, %v956, %v760
    %v974 = vsel %vm972, %v957, %v762
    %v975 = vsel %vm972, %v958, %v764
    %v976 = vsel %vm972, %v959, %v766
    %v977 = vsel %vm972, %v960, %v768
    %v978 = vsel %vm972, %v961, %v770
    %v979 = vsel %vm972, %v962, %v772
    %v980 = vsel %vm972, %v963, %v774
    %v981 = vsel %vm972, %v964, %v776
    %v982 = vsel %vm972, %v965, %v778
    %v983 = vsel %vm972, %v966, %v780
    %v984 = vsel %vm972, %v967, %v782
    %v985 = vsel %vm972, %v968, %v784
    %v986 = vsel %vm972, %v969, %v786
    %v987 = vsel %vm972, %v970, %v788
    %v988 = vsel %vm972, %v971, %v790
    %vm989 = vcmask 261120
    %v990 = vsel %vm989, %v973, %v824
    %v991 = vsel %vm989, %v974, %v826
    %v992 = vsel %vm989, %v975, %v828
    %v993 = vsel %vm989, %v976, %v830
    %v994 = vsel %vm989, %v977, %v832
    %v995 = vsel %vm989, %v978, %v834
    %v996 = vsel %vm989, %v979, %v836
    %v997 = vsel %vm989, %v980, %v838
    %v998 = vsel %vm989, %v981, %v840
    %v999 = vsel %vm989, %v982, %v842
    %v1000 = vsel %vm989, %v983, %v844
    %v1001 = vsel %vm989, %v984, %v846
    %v1002 = vsel %vm989, %v985, %v848
    %v1003 = vsel %vm989, %v986, %v850
    %v1004 = vsel %vm989, %v987, %v852
    %v1005 = vsel %vm989, %v988, %v854
    %v1006 = vld [vmem:[%s1] sm:$0xff]
    %v1007 = vld [vmem:[%s1 + $0x8] sm:$0xff]
    %v1008 = vld [vmem:[%s1 + $0x10] sm:$0xff]
    %v1009 = vld [vmem:[%s1 + $0x18] sm:$0xff]
    %v1010 = vld [vmem:[%s1 + $0x20] sm:$0xf]
    %vm1011 = vcmask 293888
    %v1013 = vsel %vm1011, %v990, 0
    %v1016 = vsel %vm1011, %v991, 0
    %v1019 = vsel %vm1011, %v992, 0
    %v1022 = vsel %vm1011, %v993, 0
    %v1025 = vsel %vm1011, %v994, 0
    %v1028 = vsel %vm1011, %v995, 0
    %v1031 = vsel %vm1011, %v996, 0
    %v1034 = vsel %vm1011, %v997, 0
    %v1037 = vsel %vm1011, %v998, 0
    %v1040 = vsel %vm1011, %v999, 0
    %v1043 = vsel %vm1011, %v1000, 0
    %v1046 = vsel %vm1011, %v1001, 0
    %v1049 = vsel %vm1011, %v1002, 0
    %v1052 = vsel %vm1011, %v1003, 0
    %v1055 = vsel %vm1011, %v1004, 0
    %v1058 = vsel %vm1011, %v1005, 0
    %vm1060 = vcmask 1043456
    %v1062 = vsel %vm1060, %v1010, 0
    %1064 = vmatprep.subr.mxu0 0.0
    %1065 = vmatpush1.msra.mxu0 %v1006
    %1066 = vmatprep.subr.mxu0 0.0
    %1067 = vmatpush1.msra.mxu0 %v1007
    %1068 = vmatprep.subr.mxu0 0.0
    %1069 = vmatpush1.msra.mxu0 %v1008
    %1070 = vmatprep.subr.mxu0 0.0
    %1071 = vmatpush1.msra.mxu0 %v1009
    %1072 = vmatprep.subr.mxu0 0.0
    %1073 = vmatpush1.msra.mxu0 %v1062
    %1074 = vmatprep.subr.mxu0 0.0
    %1075 = vmatpush1.msra.mxu0 0.0
    %1076 = vmatprep.subr.mxu0 0.0
    %1077 = vmatpush1.msra.mxu0 0.0
    %1078 = vmatprep.subr.mxu0 0.0
    %1079 = vmatpush1.msra.mxu0 0.0
    %1080 = vmatprep.subr.mxu0 0.0
    %1081 = vmatpush1.msra.mxu0 0.0
    %1082 = vmatprep.subr.mxu0 0.0
    %1083 = vmatpush1.msra.mxu0 0.0
    %1084 = vmatprep.subr.mxu0 0.0
    %1085 = vmatpush1.msra.mxu0 0.0
    %1086 = vmatprep.subr.mxu0 0.0
    %1087 = vmatpush1.msra.mxu0 0.0
    %1088 = vmatprep.subr.mxu0 0.0
    %1089 = vmatpush1.msra.mxu0 0.0
    %1090 = vmatprep.subr.mxu0 0.0
    %1091 = vmatpush1.msra.mxu0 0.0
    %1092 = vmatprep.subr.mxu0 0.0
    %1093 = vmatpush1.msra.mxu0 0.0
    %1094 = vmatprep.subr.mxu0 0.0
    %1095 = vmatpush1.msra.mxu0 0.0
    %1096 = vmatprep.subr.mxu0 0.0
    %1097 = vmatpush1.msra.mxu0 0.0
    %1098 = vmatprep.subr.mxu0 0.0
    %1099 = vmatpush1.msra.mxu0 0.0
    %1100 = vmatprep.subr.mxu0 0.0
    %1101 = vmatpush1.msra.mxu0 0.0
    %1102 = vmatprep.subr.mxu0 0.0
    %1103 = vmatpush1.msra.mxu0 0.0
    %1104 = vmatprep.subr.mxu0 0.0
    %1105 = vmatpush1.msra.mxu0 0.0
    %1106 = vmatprep.subr.mxu0 0.0
    %1107 = vmatpush1.msra.mxu0 0.0
    %1108 = vmatprep.subr.mxu0 0.0
    %1109 = vmatpush1.msra.mxu0 0.0
    %1110 = vmatprep.subr.mxu0 0.0
    %1111 = vmatpush1.msra.mxu0 0.0
    %1112 = vmatprep.subr.mxu0 0.0
    %1113 = vmatpush1.msra.mxu0 0.0
    %1114 = vmatprep.subr.mxu0 0.0
    %1115 = vmatpush1.msra.mxu0 0.0
    %1116 = vmatprep.subr.mxu0 0.0
    %1117 = vmatpush1.msra.mxu0 0.0
    %1118 = vmatprep.subr.mxu0 0.0
    %1119 = vmatpush1.msra.mxu0 0.0
    %1120 = vmatprep.subr.mxu0 0.0
    %1121 = vmatpush1.msra.mxu0 0.0
    %1122 = vmatprep.subr.mxu0 0.0
    %1123 = vmatpush1.msra.mxu0 0.0
    %1124 = vmatprep.subr.mxu0 0.0
    %1125 = vmatpush1.msra.mxu0 0.0
    %1126 = vmatprep.subr.mxu0 0.0
    %1127 = vmatpush1.msra.mxu0 0.0
    %1128 = vmatprep.mubr.f32.mxu0 0.0
    %1129 = vmatmul.mubr.f32.gmra.mrb[0].mxu0 %v1013
    %v1130 = vpop.f32.mrb[0].mxu0
    %v1131 = vadd.f32 0.0, %v1130
    %v1132 = vpop.f32.mrb[0].mxu0
    %1133 = vmatprep.mubr.f32.mxu0 0.0
    %1134 = vmatmul.mubr.f32.gmra.mrb[0].mxu0 %v1016
    %v1135 = vpop.f32.mrb[0].mxu0
    %v1136 = vadd.f32 0.0, %v1135
    %v1137 = vpop.f32.mrb[0].mxu0
    %1138 = vmatprep.mubr.f32.mxu0 0.0
    %1139 = vmatmul.mubr.f32.gmra.mrb[0].mxu0 %v1019
    %v1140 = vpop.f32.mrb[0].mxu0
    %v1141 = vadd.f32 0.0, %v1140
    %v1142 = vpop.f32.mrb[0].mxu0
    %1143 = vmatprep.mubr.f32.mxu0 0.0
    %1144 = vmatmul.mubr.f32.gmra.mrb[0].mxu0 %v1022
    %v1145 = vpop.f32.mrb[0].mxu0
    %v1146 = vadd.f32 0.0, %v1145
    %v1147 = vpop.f32.mrb[0].mxu0
    %1148 = vmatprep.mubr.f32.mxu0 0.0
    %1149 = vmatmul.mubr.f32.gmra.mrb[0].mxu0 %v1025
    %v1150 = vpop.f32.mrb[0].mxu0
    %v1151 = vadd.f32 0.0, %v1150
    %v1152 = vpop.f32.mrb[0].mxu0
    %1153 = vmatprep.mubr.f32.mxu0 0.0
    %1154 = vmatmul.mubr.f32.gmra.mrb[0].mxu0 %v1028
    %v1155 = vpop.f32.mrb[0].mxu0
    %v1156 = vadd.f32 0.0, %v1155
    %v1157 = vpop.f32.mrb[0].mxu0
    %1158 = vmatprep.mubr.f32.mxu0 0.0
    %1159 = vmatmul.mubr.f32.gmra.mrb[0].mxu0 %v1031
    %v1160 = vpop.f32.mrb[0].mxu0
    %v1161 = vadd.f32 0.0, %v1160
    %v1162 = vpop.f32.mrb[0].mxu0
    %1163 = vmatprep.mubr.f32.mxu0 0.0
    %1164 = vmatmul.mubr.f32.gmra.mrb[0].mxu0 %v1034
    %v1165 = vpop.f32.mrb[0].mxu0
    %v1166 = vadd.f32 0.0, %v1165
    %v1167 = vpop.f32.mrb[0].mxu0
    %1168 = vmatprep.mubr.f32.mxu0 0.0
    %1169 = vmatmul.mubr.f32.gmra.mrb[0].mxu0 %v1037
    %v1170 = vpop.f32.mrb[0].mxu0
    %v1171 = vadd.f32 0.0, %v1170
    %v1172 = vpop.f32.mrb[0].mxu0
    %1173 = vmatprep.mubr.f32.mxu0 0.0
    %1174 = vmatmul.mubr.f32.gmra.mrb[0].mxu0 %v1040
    %v1175 = vpop.f32.mrb[0].mxu0
    %v1176 = vadd.f32 0.0, %v1175
    %v1177 = vpop.f32.mrb[0].mxu0
    %1178 = vmatprep.mubr.f32.mxu0 0.0
    %1179 = vmatmul.mubr.f32.gmra.mrb[0].mxu0 %v1043
    %v1180 = vpop.f32.mrb[0].mxu0
    %v1181 = vadd.f32 0.0, %v1180
    %v1182 = vpop.f32.mrb[0].mxu0
    %1183 = vmatprep.mubr.f32.mxu0 0.0
    %1184 = vmatmul.mubr.f32.gmra.mrb[0].mxu0 %v1046
    %v1185 = vpop.f32.mrb[0].mxu0
    %v1186 = vadd.f32 0.0, %v1185
    %v1187 = vpop.f32.mrb[0].mxu0
    %1188 = vmatprep.mubr.f32.mxu0 0.0
    %1189 = vmatmul.mubr.f32.gmra.mrb[0].mxu0 %v1049
    %v1190 = vpop.f32.mrb[0].mxu0
    %v1191 = vadd.f32 0.0, %v1190
    %v1192 = vpop.f32.mrb[0].mxu0
    %1193 = vmatprep.mubr.f32.mxu0 0.0
    %1194 = vmatmul.mubr.f32.gmra.mrb[0].mxu0 %v1052
    %v1195 = vpop.f32.mrb[0].mxu0
    %v1196 = vadd.f32 0.0, %v1195
    %v1197 = vpop.f32.mrb[0].mxu0
    %1198 = vmatprep.mubr.f32.mxu0 0.0
    %1199 = vmatmul.mubr.f32.gmra.mrb[0].mxu0 %v1055
    %v1200 = vpop.f32.mrb[0].mxu0
    %v1201 = vadd.f32 0.0, %v1200
    %v1202 = vpop.f32.mrb[0].mxu0
    %1203 = vmatprep.mubr.f32.mxu0 0.0
    %1204 = vmatmul.mubr.f32.gmra.mrb[0].mxu0 %v1058
    %v1205 = vpop.f32.mrb[0].mxu0
    %v1206 = vadd.f32 0.0, %v1205
    %v1207 = vpop.f32.mrb[0].mxu0
    %1208 = vdwg.mxu0
    %v1209 = vsel %vm887, %v1131, 0.0
    %v1210 = vsel %vm887, %v1136, 0.0
    %v1211 = vadd.f32 %v1209, %v1210
    %v1212 = vsel %vm887, %v1141, 0.0
    %v1213 = vadd.f32 %v1211, %v1212
    %v1214 = vsel %vm887, %v1146, 0.0
    %v1215 = vadd.f32 %v1213, %v1214
    %v1216 = vsel %vm887, %v1151, 0.0
    %v1217 = vadd.f32 %v1215, %v1216
    %v1218 = vsel %vm887, %v1156, 0.0
    %v1219 = vadd.f32 %v1217, %v1218
    %v1220 = vsel %vm887, %v1161, 0.0
    %v1221 = vadd.f32 %v1219, %v1220
    %v1222 = vsel %vm887, %v1166, 0.0
    %v1223 = vadd.f32 %v1221, %v1222
    %v1224 = vsel %vm887, %v1171, 0.0
    %v1225 = vadd.f32 %v1223, %v1224
    %v1226 = vsel %vm887, %v1176, 0.0
    %v1227 = vadd.f32 %v1225, %v1226
    %v1228 = vsel %vm887, %v1181, 0.0
    %v1229 = vadd.f32 %v1227, %v1228
    %v1230 = vsel %vm887, %v1186, 0.0
    %v1231 = vadd.f32 %v1229, %v1230
    %v1232 = vsel %vm887, %v1191, 0.0
    %v1233 = vadd.f32 %v1231, %v1232
    %v1234 = vsel %vm887, %v1196, 0.0
    %v1235 = vadd.f32 %v1233, %v1234
    %v1236 = vsel %vm887, %v1201, 0.0
    %v1237 = vadd.f32 %v1235, %v1236
    %v1238 = vsel %vm887, %v1206, 0.0
    %v1239 = vadd.f32 %v1237, %v1238
    %v1240 = vrot.slane %v1239, 4
    %v1241 = vadd.f32 %v1239, %v1240
    %v1242 = vrot.slane %v1241, 2
    %v1243 = vadd.f32 %v1241, %v1242
    %v1244 = vrot.slane %v1243, 1
    %v1245 = vadd.f32 %v1243, %v1244
    %v1246 = vmul.f32 %v1131, %v1131
    %v1247 = vmul.f32 %v1136, %v1136
    %v1248 = vmul.f32 %v1141, %v1141
    %v1249 = vmul.f32 %v1146, %v1146
    %v1250 = vmul.f32 %v1151, %v1151
    %v1251 = vmul.f32 %v1156, %v1156
    %v1252 = vmul.f32 %v1161, %v1161
    %v1253 = vmul.f32 %v1166, %v1166
    %v1254 = vmul.f32 %v1171, %v1171
    %v1255 = vmul.f32 %v1176, %v1176
    %v1256 = vmul.f32 %v1181, %v1181
    %v1257 = vmul.f32 %v1186, %v1186
    %v1258 = vmul.f32 %v1191, %v1191
    %v1259 = vmul.f32 %v1196, %v1196
    %v1260 = vmul.f32 %v1201, %v1201
    %v1261 = vmul.f32 %v1206, %v1206
    %v1262 = vsel %vm887, %v1246, 0.0
    %v1263 = vsel %vm887, %v1247, 0.0
    %v1264 = vadd.f32 %v1262, %v1263
    %v1265 = vsel %vm887, %v1248, 0.0
    %v1266 = vadd.f32 %v1264, %v1265
    %v1267 = vsel %vm887, %v1249, 0.0
    %v1268 = vadd.f32 %v1266, %v1267
    %v1269 = vsel %vm887, %v1250, 0.0
    %v1270 = vadd.f32 %v1268, %v1269
    %v1271 = vsel %vm887, %v1251, 0.0
    %v1272 = vadd.f32 %v1270, %v1271
    %v1273 = vsel %vm887, %v1252, 0.0
    %v1274 = vadd.f32 %v1272, %v1273
    %v1275 = vsel %vm887, %v1253, 0.0
    %v1276 = vadd.f32 %v1274, %v1275
    %v1277 = vsel %vm887, %v1254, 0.0
    %v1278 = vadd.f32 %v1276, %v1277
    %v1279 = vsel %vm887, %v1255, 0.0
    %v1280 = vadd.f32 %v1278, %v1279
    %v1281 = vsel %vm887, %v1256, 0.0
    %v1282 = vadd.f32 %v1280, %v1281
    %v1283 = vsel %vm887, %v1257, 0.0
    %v1284 = vadd.f32 %v1282, %v1283
    %v1285 = vsel %vm887, %v1258, 0.0
    %v1286 = vadd.f32 %v1284, %v1285
    %v1287 = vsel %vm887, %v1259, 0.0
    %v1288 = vadd.f32 %v1286, %v1287
    %v1289 = vsel %vm887, %v1260, 0.0
    %v1290 = vadd.f32 %v1288, %v1289
    %v1291 = vsel %vm887, %v1261, 0.0
    %v1292 = vadd.f32 %v1290, %v1291
    %v1293 = vrot.slane %v1292, 4
    %v1294 = vadd.f32 %v1292, %v1293
    %v1295 = vrot.slane %v1294, 2
    %v1296 = vadd.f32 %v1294, %v1295
    %v1297 = vrot.slane %v1296, 1
    %v1298 = vadd.f32 %v1296, %v1297
    %v1299 = vmul.f32 %v1245, 0.0078125
    %v1300 = vmul.f32 %v1298, 0.0078125
    %v1301 = vmul.f32 %v1299, %v1299
    %v1302 = vsub.f32 %v1300, %v1301
    %v1303 = vsub.f32 %v1131, %v1299
    %v1304 = vsub.f32 %v1136, %v1299
    %v1305 = vsub.f32 %v1141, %v1299
    %v1306 = vsub.f32 %v1146, %v1299
    %v1307 = vsub.f32 %v1151, %v1299
    %v1308 = vsub.f32 %v1156, %v1299
    %v1309 = vsub.f32 %v1161, %v1299
    %v1310 = vsub.f32 %v1166, %v1299
    %v1311 = vsub.f32 %v1171, %v1299
    %v1312 = vsub.f32 %v1176, %v1299
    %v1313 = vsub.f32 %v1181, %v1299
    %v1314 = vsub.f32 %v1186, %v1299
    %v1315 = vsub.f32 %v1191, %v1299
    %v1316 = vsub.f32 %v1196, %v1299
    %v1317 = vsub.f32 %v1201, %v1299
    %v1318 = vsub.f32 %v1206, %v1299
    %v1319 = vadd.f32 %v1302, 1e-05
    %v1320 = vrsqrt.pop %v1319
    %v1321 = vmul.f32 %v1303, %v1320
    %v1322 = vmul.f32 %v1304, %v1320
    %v1323 = vmul.f32 %v1305, %v1320
    %v1324 = vmul.f32 %v1306, %v1320
    %v1325 = vmul.f32 %v1307, %v1320
    %v1326 = vmul.f32 %v1308, %v1320
    %v1327 = vmul.f32 %v1309, %v1320
    %v1328 = vmul.f32 %v1310, %v1320
    %v1329 = vmul.f32 %v1311, %v1320
    %v1330 = vmul.f32 %v1312, %v1320
    %v1331 = vmul.f32 %v1313, %v1320
    %v1332 = vmul.f32 %v1314, %v1320
    %v1333 = vmul.f32 %v1315, %v1320
    %v1334 = vmul.f32 %v1316, %v1320
    %v1335 = vmul.f32 %v1317, %v1320
    %v1336 = vmul.f32 %v1318, %v1320
    %v1337 = vld [vmem:[%s2] sm:$0x1]
    %v1339 = vlaneseq
    %v1340 = vshrl.u32 %v1339, 7
    %v1341 = vsub.s32 0, %v1340
    %v1342 = vrot.slane %v1337, %v1341
    %v1344 = vmul.f32 %v1321, %v1342
    %v1345 = vmul.f32 %v1322, %v1342
    %v1346 = vmul.f32 %v1323, %v1342
    %v1347 = vmul.f32 %v1324, %v1342
    %v1348 = vmul.f32 %v1325, %v1342
    %v1349 = vmul.f32 %v1326, %v1342
    %v1350 = vmul.f32 %v1327, %v1342
    %v1351 = vmul.f32 %v1328, %v1342
    %v1352 = vmul.f32 %v1329, %v1342
    %v1353 = vmul.f32 %v1330, %v1342
    %v1354 = vmul.f32 %v1331, %v1342
    %v1355 = vmul.f32 %v1332, %v1342
    %v1356 = vmul.f32 %v1333, %v1342
    %v1357 = vmul.f32 %v1334, %v1342
    %v1358 = vmul.f32 %v1335, %v1342
    %v1359 = vmul.f32 %v1336, %v1342
    %v1360 = vld [vmem:[%s3] sm:$0x1]
    %v1362 = vlaneseq
    %v1363 = vshrl.u32 %v1362, 7
    %v1364 = vsub.s32 0, %v1363
    %v1365 = vrot.slane %v1360, %v1364
    %v1367 = vadd.f32 %v1344, %v1365
    %v1368 = vadd.f32 %v1345, %v1365
    %v1369 = vadd.f32 %v1346, %v1365
    %v1370 = vadd.f32 %v1347, %v1365
    %v1371 = vadd.f32 %v1348, %v1365
    %v1372 = vadd.f32 %v1349, %v1365
    %v1373 = vadd.f32 %v1350, %v1365
    %v1374 = vadd.f32 %v1351, %v1365
    %v1375 = vadd.f32 %v1352, %v1365
    %v1376 = vadd.f32 %v1353, %v1365
    %v1377 = vadd.f32 %v1354, %v1365
    %v1378 = vadd.f32 %v1355, %v1365
    %v1379 = vadd.f32 %v1356, %v1365
    %v1380 = vadd.f32 %v1357, %v1365
    %v1381 = vadd.f32 %v1358, %v1365
    %v1382 = vadd.f32 %v1359, %v1365
    %v1383 = vmax.f32 %v1367, 0.0
    %v1384 = vmax.f32 %v1368, 0.0
    %v1385 = vmax.f32 %v1369, 0.0
    %v1386 = vmax.f32 %v1370, 0.0
    %v1387 = vmax.f32 %v1371, 0.0
    %v1388 = vmax.f32 %v1372, 0.0
    %v1389 = vmax.f32 %v1373, 0.0
    %v1390 = vmax.f32 %v1374, 0.0
    %v1391 = vmax.f32 %v1375, 0.0
    %v1392 = vmax.f32 %v1376, 0.0
    %v1393 = vmax.f32 %v1377, 0.0
    %v1394 = vmax.f32 %v1378, 0.0
    %v1395 = vmax.f32 %v1379, 0.0
    %v1396 = vmax.f32 %v1380, 0.0
    %v1397 = vmax.f32 %v1381, 0.0
    %v1398 = vmax.f32 %v1382, 0.0
    %1399 = vst.msk [vmem:[#allocation3] sm:$0xff] %vm887, 0.0
    %vm1400 = vcmask 58368
    %1401 = vst.msk [vmem:[#allocation3 + $0x8] sm:$0x3] %vm1400, 0.0
    %1402 = vst.msk [vmem:[#allocation3 + $0x10] sm:$0xff] %vm887, 0.0
    %1403 = vst.msk [vmem:[#allocation3 + $0x18] sm:$0x3] %vm1400, 0.0
    %1404 = vst.msk [vmem:[#allocation3 + $0x20] sm:$0xff] %vm887, 0.0
    %1405 = vst.msk [vmem:[#allocation3 + $0x28] sm:$0x3] %vm1400, 0.0
    %1406 = vst.msk [vmem:[#allocation3 + $0x30] sm:$0xff] %vm887, 0.0
    %1407 = vst.msk [vmem:[#allocation3 + $0x38] sm:$0x3] %vm1400, 0.0
    %1408 = vst.msk [vmem:[#allocation3 + $0x40] sm:$0xff] %vm887, 0.0
    %1409 = vst.msk [vmem:[#allocation3 + $0x48] sm:$0x3] %vm1400, 0.0
    %1410 = vst.msk [vmem:[#allocation3 + $0x50] sm:$0xff] %vm887, 0.0
    %1411 = vst.msk [vmem:[#allocation3 + $0x58] sm:$0x3] %vm1400, 0.0
    %1412 = vst.msk [vmem:[#allocation3 + $0x60] sm:$0xff] %vm887, 0.0
    %1413 = vst.msk [vmem:[#allocation3 + $0x68] sm:$0x3] %vm1400, 0.0
    %1414 = vst.msk [vmem:[#allocation3 + $0x70] sm:$0xff] %vm887, 0.0
    %1415 = vst.msk [vmem:[#allocation3 + $0x78] sm:$0x3] %vm1400, 0.0
    %1416 = vst.msk [vmem:[#allocation3 + $0x80] sm:$0xff] %vm887, 0.0
    %1417 = vst.msk [vmem:[#allocation3 + $0x88] sm:$0x3] %vm1400, 0.0
    %1418 = vst.msk [vmem:[#allocation3 + $0x90] sm:$0xff] %vm887, 0.0
    %1419 = vst.msk [vmem:[#allocation3 + $0x98] sm:$0x3] %vm1400, 0.0
    %1420 = vst.msk [vmem:[#allocation3 + $0xa0] sm:$0xff] %vm887, 0.0
    %1421 = vst.msk [vmem:[#allocation3 + $0xa8] sm:$0x3] %vm1400, 0.0
    %1422 = vst.msk [vmem:[#allocation3 + $0xb0] sm:$0xff] %vm887, 0.0
    %1423 = vst.msk [vmem:[#allocation3 + $0xb8] sm:$0x3] %vm1400, 0.0
    %1424 = vst.msk [vmem:[#allocation3 + $0xc0] sm:$0xff] %vm887, 0.0
    %1425 = vst.msk [vmem:[#allocation3 + $0xc8] sm:$0x3] %vm1400, 0.0
    %1426 = vst.msk [vmem:[#allocation3 + $0xd0] sm:$0xff] %vm887, 0.0
    %1427 = vst.msk [vmem:[#allocation3 + $0xd8] sm:$0x3] %vm1400, 0.0
    %1428 = vst.msk [vmem:[#allocation3 + $0xe0] sm:$0xff] %vm887, 0.0
    %1429 = vst.msk [vmem:[#allocation3 + $0xe8] sm:$0x3] %vm1400, 0.0
    %1430 = vst.msk [vmem:[#allocation3 + $0xf0] sm:$0xff] %vm887, 0.0
    %1431 = vst.msk [vmem:[#allocation3 + $0xf8] sm:$0x3] %vm1400, 0.0
    %1432 = vst.msk [vmem:[#allocation3 + $0x100] sm:$0xff] %vm887, 0.0
    %1433 = vst.msk [vmem:[#allocation3 + $0x108] sm:$0x3] %vm1400, 0.0
    %1434 = vst.msk [vmem:[#allocation3 + $0x110] sm:$0xff] %vm887, 0.0
    %1435 = vst.msk [vmem:[#allocation3 + $0x118] sm:$0x3] %vm1400, 0.0
    %1436 = vst.msk [vmem:[#allocation3 + $0x120] sm:$0xff] %vm887, 0.0
    %1437 = vst.msk [vmem:[#allocation3 + $0x128] sm:$0x3] %vm1400, 0.0
    %1438 = vst.msk [vmem:[#allocation3 + $0x130] sm:$0xff] %vm887, 0.0
    %1439 = vst.msk [vmem:[#allocation3 + $0x138] sm:$0x3] %vm1400, 0.0
    %s1440 = scalar_lea.vmem [#allocation3], 16
    %1441 = vst.msk [vmem:[%s1440 + $0x1] sm:$0xff] %vm887, %v1383
    %1442 = vst.msk [vmem:[%s1440 + $0x11] sm:$0xff] %vm887, %v1384
    %1443 = vst.msk [vmem:[%s1440 + $0x21] sm:$0xff] %vm887, %v1385
    %1444 = vst.msk [vmem:[%s1440 + $0x31] sm:$0xff] %vm887, %v1386
    %1445 = vst.msk [vmem:[%s1440 + $0x41] sm:$0xff] %vm887, %v1387
    %1446 = vst.msk [vmem:[%s1440 + $0x51] sm:$0xff] %vm887, %v1388
    %1447 = vst.msk [vmem:[%s1440 + $0x61] sm:$0xff] %vm887, %v1389
    %1448 = vst.msk [vmem:[%s1440 + $0x71] sm:$0xff] %vm887, %v1390
    %1449 = vst.msk [vmem:[%s1440 + $0xa1] sm:$0xff] %vm887, %v1391
    %1450 = vst.msk [vmem:[%s1440 + $0xb1] sm:$0xff] %vm887, %v1392
    %1451 = vst.msk [vmem:[%s1440 + $0xc1] sm:$0xff] %vm887, %v1393
    %1452 = vst.msk [vmem:[%s1440 + $0xd1] sm:$0xff] %vm887, %v1394
    %1453 = vst.msk [vmem:[%s1440 + $0xe1] sm:$0xff] %vm887, %v1395
    %1454 = vst.msk [vmem:[%s1440 + $0xf1] sm:$0xff] %vm887, %v1396
    %1455 = vst.msk [vmem:[%s1440 + $0x101] sm:$0xff] %vm887, %v1397
    %1456 = vst.msk [vmem:[%s1440 + $0x111] sm:$0xff] %vm887, %v1398
    %v1457 = vld [vmem:[#allocation3] sm:$0xff]
    %v1458 = vld [vmem:[#allocation3 + $0x10] sm:$0xff]
    %v1459 = vld [vmem:[#allocation3 + $0x20] sm:$0xff]
    %v1460 = vld [vmem:[#allocation3 + $0x30] sm:$0xff]
    %v1461 = vld [vmem:[#allocation3 + $0x40] sm:$0xff]
    %v1462 = vld [vmem:[#allocation3 + $0x50] sm:$0xff]
    %v1463 = vld [vmem:[#allocation3 + $0x60] sm:$0xff]
    %v1464 = vld [vmem:[#allocation3 + $0x70] sm:$0xff]
    %v1465 = vld [vmem:[#allocation3 + $0xa0] sm:$0xff]
    %v1466 = vld [vmem:[#allocation3 + $0xb0] sm:$0xff]
    %v1467 = vld [vmem:[#allocation3 + $0xc0] sm:$0xff]
    %v1468 = vld [vmem:[#allocation3 + $0xd0] sm:$0xff]
    %v1469 = vld [vmem:[#allocation3 + $0xe0] sm:$0xff]
    %v1470 = vld [vmem:[#allocation3 + $0xf0] sm:$0xff]
    %v1471 = vld [vmem:[#allocation3 + $0x100] sm:$0xff]
    %v1472 = vld [vmem:[#allocation3 + $0x110] sm:$0xff]
    %v1473 = vld [vmem:[#allocation3 + $0x1] sm:$0xff]
    %v1474 = vld [vmem:[#allocation3 + $0x11] sm:$0xff]
    %v1475 = vld [vmem:[#allocation3 + $0x21] sm:$0xff]
    %v1476 = vld [vmem:[#allocation3 + $0x31] sm:$0xff]
    %v1477 = vld [vmem:[#allocation3 + $0x41] sm:$0xff]
    %v1478 = vld [vmem:[#allocation3 + $0x51] sm:$0xff]
    %v1479 = vld [vmem:[#allocation3 + $0x61] sm:$0xff]
    %v1480 = vld [vmem:[#allocation3 + $0x71] sm:$0xff]
    %v1481 = vld [vmem:[#allocation3 + $0xa1] sm:$0xff]
    %v1482 = vld [vmem:[#allocation3 + $0xb1] sm:$0xff]
    %v1483 = vld [vmem:[#allocation3 + $0xc1] sm:$0xff]
    %v1484 = vld [vmem:[#allocation3 + $0xd1] sm:$0xff]
    %v1485 = vld [vmem:[#allocation3 + $0xe1] sm:$0xff]
    %v1486 = vld [vmem:[#allocation3 + $0xf1] sm:$0xff]
    %v1487 = vld [vmem:[#allocation3 + $0x101] sm:$0xff]
    %v1488 = vld [vmem:[#allocation3 + $0x111] sm:$0xff]
    %v1489 = vld [vmem:[#allocation3 + $0x2] sm:$0xff]
    %v1490 = vld [vmem:[#allocation3 + $0x12] sm:$0xff]
    %v1491 = vld [vmem:[#allocation3 + $0x22] sm:$0xff]
    %v1492 = vld [vmem:[#allocation3 + $0x32] sm:$0xff]
    %v1493 = vld [vmem:[#allocation3 + $0x42] sm:$0xff]
    %v1494 = vld [vmem:[#allocation3 + $0x52] sm:$0xff]
    %v1495 = vld [vmem:[#allocation3 + $0x62] sm:$0xff]
    %v1496 = vld [vmem:[#allocation3 + $0x72] sm:$0xff]
    %v1497 = vld [vmem:[#allocation3 + $0xa2] sm:$0xff]
    %v1498 = vld [vmem:[#allocation3 + $0xb2] sm:$0xff]
    %v1499 = vld [vmem:[#allocation3 + $0xc2] sm:$0xff]
    %v1500 = vld [vmem:[#allocation3 + $0xd2] sm:$0xff]
    %v1501 = vld [vmem:[#allocation3 + $0xe2] sm:$0xff]
    %v1502 = vld [vmem:[#allocation3 + $0xf2] sm:$0xff]
    %v1503 = vld [vmem:[#allocation3 + $0x102] sm:$0xff]
    %v1504 = vld [vmem:[#allocation3 + $0x112] sm:$0xff]
    %v1505 = vld [vmem:[%s1440] sm:$0xff]
    %v1506 = vld [vmem:[%s1440 + $0x10] sm:$0xff]
    %v1507 = vld [vmem:[%s1440 + $0x20] sm:$0xff]
    %v1508 = vld [vmem:[%s1440 + $0x30] sm:$0xff]
    %v1509 = vld [vmem:[%s1440 + $0x40] sm:$0xff]
    %v1510 = vld [vmem:[%s1440 + $0x50] sm:$0xff]
    %v1511 = vld [vmem:[%s1440 + $0x60] sm:$0xff]
    %v1512 = vld [vmem:[%s1440 + $0x70] sm:$0xff]
    %v1513 = vld [vmem:[%s1440 + $0xa0] sm:$0xff]
    %v1514 = vld [vmem:[%s1440 + $0xb0] sm:$0xff]
    %v1515 = vld [vmem:[%s1440 + $0xc0] sm:$0xff]
    %v1516 = vld [vmem:[%s1440 + $0xd0] sm:$0xff]
    %v1517 = vld [vmem:[%s1440 + $0xe0] sm:$0xff]
    %v1518 = vld [vmem:[%s1440 + $0xf0] sm:$0xff]
    %v1519 = vld [vmem:[%s1440 + $0x100] sm:$0xff]
    %v1520 = vld [vmem:[%s1440 + $0x110] sm:$0xff]
    %v1521 = vld [vmem:[%s1440 + $0x1] sm:$0xff]
    %v1522 = vld [vmem:[%s1440 + $0x11] sm:$0xff]
    %v1523 = vld [vmem:[%s1440 + $0x21] sm:$0xff]
    %v1524 = vld [vmem:[%s1440 + $0x31] sm:$0xff]
    %v1525 = vld [vmem:[%s1440 + $0x41] sm:$0xff]
    %v1526 = vld [vmem:[%s1440 + $0x51] sm:$0xff]
    %v1527 = vld [vmem:[%s1440 + $0x61] sm:$0xff]
    %v1528 = vld [vmem:[%s1440 + $0x71] sm:$0xff]
    %v1529 = vld [vmem:[%s1440 + $0xa1] sm:$0xff]
    %v1530 = vld [vmem:[%s1440 + $0xb1] sm:$0xff]
    %v1531 = vld [vmem:[%s1440 + $0xc1] sm:$0xff]
    %v1532 = vld [vmem:[%s1440 + $0xd1] sm:$0xff]
    %v1533 = vld [vmem:[%s1440 + $0xe1] sm:$0xff]
    %v1534 = vld [vmem:[%s1440 + $0xf1] sm:$0xff]
    %v1535 = vld [vmem:[%s1440 + $0x101] sm:$0xff]
    %v1536 = vld [vmem:[%s1440 + $0x111] sm:$0xff]
    %v1537 = vld [vmem:[%s1440 + $0x2] sm:$0xff]
    %v1538 = vld [vmem:[%s1440 + $0x12] sm:$0xff]
    %v1539 = vld [vmem:[%s1440 + $0x22] sm:$0xff]
    %v1540 = vld [vmem:[%s1440 + $0x32] sm:$0xff]
    %v1541 = vld [vmem:[%s1440 + $0x42] sm:$0xff]
    %v1542 = vld [vmem:[%s1440 + $0x52] sm:$0xff]
    %v1543 = vld [vmem:[%s1440 + $0x62] sm:$0xff]
    %v1544 = vld [vmem:[%s1440 + $0x72] sm:$0xff]
    %v1545 = vld [vmem:[%s1440 + $0xa2] sm:$0xff]
    %v1546 = vld [vmem:[%s1440 + $0xb2] sm:$0xff]
    %v1547 = vld [vmem:[%s1440 + $0xc2] sm:$0xff]
    %v1548 = vld [vmem:[%s1440 + $0xd2] sm:$0xff]
    %v1549 = vld [vmem:[%s1440 + $0xe2] sm:$0xff]
    %v1550 = vld [vmem:[%s1440 + $0xf2] sm:$0xff]
    %v1551 = vld [vmem:[%s1440 + $0x102] sm:$0xff]
    %v1552 = vld [vmem:[%s1440 + $0x112] sm:$0xff]
    %s1553 = scalar_lea.vmem [#allocation3], 32
    %v1554 = vld [vmem:[%s1553] sm:$0xff]
    %v1555 = vld [vmem:[%s1553 + $0x10] sm:$0xff]
    %v1556 = vld [vmem:[%s1553 + $0x20] sm:$0xff]
    %v1557 = vld [vmem:[%s1553 + $0x30] sm:$0xff]
    %v1558 = vld [vmem:[%s1553 + $0x40] sm:$0xff]
    %v1559 = vld [vmem:[%s1553 + $0x50] sm:$0xff]
    %v1560 = vld [vmem:[%s1553 + $0x60] sm:$0xff]
    %v1561 = vld [vmem:[%s1553 + $0x70] sm:$0xff]
    %v1562 = vld [vmem:[%s1553 + $0xa0] sm:$0xff]
    %v1563 = vld [vmem:[%s1553 + $0xb0] sm:$0xff]
    %v1564 = vld [vmem:[%s1553 + $0xc0] sm:$0xff]
    %v1565 = vld [vmem:[%s1553 + $0xd0] sm:$0xff]
    %v1566 = vld [vmem:[%s1553 + $0xe0] sm:$0xff]
    %v1567 = vld [vmem:[%s1553 + $0xf0] sm:$0xff]
    %v1568 = vld [vmem:[%s1553 + $0x100] sm:$0xff]
    %v1569 = vld [vmem:[%s1553 + $0x110] sm:$0xff]
    %v1570 = vld [vmem:[%s1553 + $0x1] sm:$0xff]
    %v1571 = vld [vmem:[%s1553 + $0x11] sm:$0xff]
    %v1572 = vld [vmem:[%s1553 + $0x21] sm:$0xff]
    %v1573 = vld [vmem:[%s1553 + $0x31] sm:$0xff]
    %v1574 = vld [vmem:[%s1553 + $0x41] sm:$0xff]
    %v1575 = vld [vmem:[%s1553 + $0x51] sm:$0xff]
    %v1576 = vld [vmem:[%s1553 + $0x61] sm:$0xff]
    %v1577 = vld [vmem:[%s1553 + $0x71] sm:$0xff]
    %v1578 = vld [vmem:[%s1553 + $0xa1] sm:$0xff]
    %v1579 = vld [vmem:[%s1553 + $0xb1] sm:$0xff]
    %v1580 = vld [vmem:[%s1553 + $0xc1] sm:$0xff]
    %v1581 = vld [vmem:[%s1553 + $0xd1] sm:$0xff]
    %v1582 = vld [vmem:[%s1553 + $0xe1] sm:$0xff]
    %v1583 = vld [vmem:[%s1553 + $0xf1] sm:$0xff]
    %v1584 = vld [vmem:[%s1553 + $0x101] sm:$0xff]
    %v1585 = vld [vmem:[%s1553 + $0x111] sm:$0xff]
    %v1586 = vld [vmem:[%s1553 + $0x2] sm:$0xff]
    %v1587 = vld [vmem:[%s1553 + $0x12] sm:$0xff]
    %v1588 = vld [vmem:[%s1553 + $0x22] sm:$0xff]
    %v1589 = vld [vmem:[%s1553 + $0x32] sm:$0xff]
    %v1590 = vld [vmem:[%s1553 + $0x42] sm:$0xff]
    %v1591 = vld [vmem:[%s1553 + $0x52] sm:$0xff]
    %v1592 = vld [vmem:[%s1553 + $0x62] sm:$0xff]
    %v1593 = vld [vmem:[%s1553 + $0x72] sm:$0xff]
    %v1594 = vld [vmem:[%s1553 + $0xa2] sm:$0xff]
    %v1595 = vld [vmem:[%s1553 + $0xb2] sm:$0xff]
    %v1596 = vld [vmem:[%s1553 + $0xc2] sm:$0xff]
    %v1597 = vld [vmem:[%s1553 + $0xd2] sm:$0xff]
    %v1598 = vld [vmem:[%s1553 + $0xe2] sm:$0xff]
    %v1599 = vld [vmem:[%s1553 + $0xf2] sm:$0xff]
    %v1600 = vld [vmem:[%s1553 + $0x102] sm:$0xff]
    %v1601 = vld [vmem:[%s1553 + $0x112] sm:$0xff]
    %1618 = vrot.lane.b32.xlu0 %v1473, 8
    %v1619 = vpop.permute.xlu0 %1618
    %1620 = vrot.lane.b32.xlu0 %v1474, 8
    %v1621 = vpop.permute.xlu0 %1620
    %1622 = vrot.lane.b32.xlu0 %v1475, 8
    %v1623 = vpop.permute.xlu0 %1622
    %1624 = vrot.lane.b32.xlu0 %v1476, 8
    %v1625 = vpop.permute.xlu0 %1624
    %1626 = vrot.lane.b32.xlu0 %v1477, 8
    %v1627 = vpop.permute.xlu0 %1626
    %1628 = vrot.lane.b32.xlu0 %v1478, 8
    %v1629 = vpop.permute.xlu0 %1628
    %1630 = vrot.lane.b32.xlu0 %v1479, 8
    %v1631 = vpop.permute.xlu0 %1630
    %1632 = vrot.lane.b32.xlu0 %v1480, 8
    %v1633 = vpop.permute.xlu0 %1632
    %1634 = vrot.lane.b32.xlu0 %v1481, 8
    %v1635 = vpop.permute.xlu0 %1634
    %1636 = vrot.lane.b32.xlu0 %v1482, 8
    %v1637 = vpop.permute.xlu0 %1636
    %1638 = vrot.lane.b32.xlu0 %v1483, 8
    %v1639 = vpop.permute.xlu0 %1638
    %1640 = vrot.lane.b32.xlu0 %v1484, 8
    %v1641 = vpop.permute.xlu0 %1640
    %1642 = vrot.lane.b32.xlu0 %v1485, 8
    %v1643 = vpop.permute.xlu0 %1642
    %1644 = vrot.lane.b32.xlu0 %v1486, 8
    %v1645 = vpop.permute.xlu0 %1644
    %1646 = vrot.lane.b32.xlu0 %v1487, 8
    %v1647 = vpop.permute.xlu0 %1646
    %1648 = vrot.lane.b32.xlu0 %v1488, 8
    %v1649 = vpop.permute.xlu0 %1648
    %1682 = vrot.lane.b32.xlu0 %v1489, 16
    %v1683 = vpop.permute.xlu0 %1682
    %1684 = vrot.lane.b32.xlu0 %v1490, 16
    %v1685 = vpop.permute.xlu0 %1684
    %1686 = vrot.lane.b32.xlu0 %v1491, 16
    %v1687 = vpop.permute.xlu0 %1686
    %1688 = vrot.lane.b32.xlu0 %v1492, 16
    %v1689 = vpop.permute.xlu0 %1688
    %1690 = vrot.lane.b32.xlu0 %v1493, 16
    %v1691 = vpop.permute.xlu0 %1690
    %1692 = vrot.lane.b32.xlu0 %v1494, 16
    %v1693 = vpop.permute.xlu0 %1692
    %1694 = vrot.lane.b32.xlu0 %v1495, 16
    %v1695 = vpop.permute.xlu0 %1694
    %1696 = vrot.lane.b32.xlu0 %v1496, 16
    %v1697 = vpop.permute.xlu0 %1696
    %1698 = vrot.lane.b32.xlu0 %v1497, 16
    %v1699 = vpop.permute.xlu0 %1698
    %1700 = vrot.lane.b32.xlu0 %v1498, 16
    %v1701 = vpop.permute.xlu0 %1700
    %1702 = vrot.lane.b32.xlu0 %v1499, 16
    %v1703 = vpop.permute.xlu0 %1702
    %1704 = vrot.lane.b32.xlu0 %v1500, 16
    %v1705 = vpop.permute.xlu0 %1704
    %1706 = vrot.lane.b32.xlu0 %v1501, 16
    %v1707 = vpop.permute.xlu0 %1706
    %1708 = vrot.lane.b32.xlu0 %v1502, 16
    %v1709 = vpop.permute.xlu0 %1708
    %1710 = vrot.lane.b32.xlu0 %v1503, 16
    %v1711 = vpop.permute.xlu0 %1710
    %1712 = vrot.lane.b32.xlu0 %v1504, 16
    %v1713 = vpop.permute.xlu0 %1712
    %1746 = vrot.lane.b32.xlu0 %v1505, 24
    %v1747 = vpop.permute.xlu0 %1746
    %1748 = vrot.lane.b32.xlu0 %v1506, 24
    %v1749 = vpop.permute.xlu0 %1748
    %1750 = vrot.lane.b32.xlu0 %v1507, 24
    %v1751 = vpop.permute.xlu0 %1750
    %1752 = vrot.lane.b32.xlu0 %v1508, 24
    %v1753 = vpop.permute.xlu0 %1752
    %1754 = vrot.lane.b32.xlu0 %v1509, 24
    %v1755 = vpop.permute.xlu0 %1754
    %1756 = vrot.lane.b32.xlu0 %v1510, 24
    %v1757 = vpop.permute.xlu0 %1756
    %1758 = vrot.lane.b32.xlu0 %v1511, 24
    %v1759 = vpop.permute.xlu0 %1758
    %1760 = vrot.lane.b32.xlu0 %v1512, 24
    %v1761 = vpop.permute.xlu0 %1760
    %1762 = vrot.lane.b32.xlu0 %v1513, 24
    %v1763 = vpop.permute.xlu0 %1762
    %1764 = vrot.lane.b32.xlu0 %v1514, 24
    %v1765 = vpop.permute.xlu0 %1764
    %1766 = vrot.lane.b32.xlu0 %v1515, 24
    %v1767 = vpop.permute.xlu0 %1766
    %1768 = vrot.lane.b32.xlu0 %v1516, 24
    %v1769 = vpop.permute.xlu0 %1768
    %1770 = vrot.lane.b32.xlu0 %v1517, 24
    %v1771 = vpop.permute.xlu0 %1770
    %1772 = vrot.lane.b32.xlu0 %v1518, 24
    %v1773 = vpop.permute.xlu0 %1772
    %1774 = vrot.lane.b32.xlu0 %v1519, 24
    %v1775 = vpop.permute.xlu0 %1774
    %1776 = vrot.lane.b32.xlu0 %v1520, 24
    %v1777 = vpop.permute.xlu0 %1776
    %1810 = vrot.lane.b32.xlu0 %v1521, 32
    %v1811 = vpop.permute.xlu0 %1810
    %1812 = vrot.lane.b32.xlu0 %v1522, 32
    %v1813 = vpop.permute.xlu0 %1812
    %1814 = vrot.lane.b32.xlu0 %v1523, 32
    %v1815 = vpop.permute.xlu0 %1814
    %1816 = vrot.lane.b32.xlu0 %v1524, 32
    %v1817 = vpop.permute.xlu0 %1816
    %1818 = vrot.lane.b32.xlu0 %v1525, 32
    %v1819 = vpop.permute.xlu0 %1818
    %1820 = vrot.lane.b32.xlu0 %v1526, 32
    %v1821 = vpop.permute.xlu0 %1820
    %1822 = vrot.lane.b32.xlu0 %v1527, 32
    %v1823 = vpop.permute.xlu0 %1822
    %1824 = vrot.lane.b32.xlu0 %v1528, 32
    %v1825 = vpop.permute.xlu0 %1824
    %1826 = vrot.lane.b32.xlu0 %v1529, 32
    %v1827 = vpop.permute.xlu0 %1826
    %1828 = vrot.lane.b32.xlu0 %v1530, 32
    %v1829 = vpop.permute.xlu0 %1828
    %1830 = vrot.lane.b32.xlu0 %v1531, 32
    %v1831 = vpop.permute.xlu0 %1830
    %1832 = vrot.lane.b32.xlu0 %v1532, 32
    %v1833 = vpop.permute.xlu0 %1832
    %1834 = vrot.lane.b32.xlu0 %v1533, 32
    %v1835 = vpop.permute.xlu0 %1834
    %1836 = vrot.lane.b32.xlu0 %v1534, 32
    %v1837 = vpop.permute.xlu0 %1836
    %1838 = vrot.lane.b32.xlu0 %v1535, 32
    %v1839 = vpop.permute.xlu0 %1838
    %1840 = vrot.lane.b32.xlu0 %v1536, 32
    %v1841 = vpop.permute.xlu0 %1840
    %1874 = vrot.lane.b32.xlu0 %v1537, 40
    %v1875 = vpop.permute.xlu0 %1874
    %1876 = vrot.lane.b32.xlu0 %v1538, 40
    %v1877 = vpop.permute.xlu0 %1876
    %1878 = vrot.lane.b32.xlu0 %v1539, 40
    %v1879 = vpop.permute.xlu0 %1878
    %1880 = vrot.lane.b32.xlu0 %v1540, 40
    %v1881 = vpop.permute.xlu0 %1880
    %1882 = vrot.lane.b32.xlu0 %v1541, 40
    %v1883 = vpop.permute.xlu0 %1882
    %1884 = vrot.lane.b32.xlu0 %v1542, 40
    %v1885 = vpop.permute.xlu0 %1884
    %1886 = vrot.lane.b32.xlu0 %v1543, 40
    %v1887 = vpop.permute.xlu0 %1886
    %1888 = vrot.lane.b32.xlu0 %v1544, 40
    %v1889 = vpop.permute.xlu0 %1888
    %1890 = vrot.lane.b32.xlu0 %v1545, 40
    %v1891 = vpop.permute.xlu0 %1890
    %1892 = vrot.lane.b32.xlu0 %v1546, 40
    %v1893 = vpop.permute.xlu0 %1892
    %1894 = vrot.lane.b32.xlu0 %v1547, 40
    %v1895 = vpop.permute.xlu0 %1894
    %1896 = vrot.lane.b32.xlu0 %v1548, 40
    %v1897 = vpop.permute.xlu0 %1896
    %1898 = vrot.lane.b32.xlu0 %v1549, 40
    %v1899 = vpop.permute.xlu0 %1898
    %1900 = vrot.lane.b32.xlu0 %v1550, 40
    %v1901 = vpop.permute.xlu0 %1900
    %1902 = vrot.lane.b32.xlu0 %v1551, 40
    %v1903 = vpop.permute.xlu0 %1902
    %1904 = vrot.lane.b32.xlu0 %v1552, 40
    %v1905 = vpop.permute.xlu0 %1904
    %1938 = vrot.lane.b32.xlu0 %v1554, 48
    %v1939 = vpop.permute.xlu0 %1938
    %1940 = vrot.lane.b32.xlu0 %v1555, 48
    %v1941 = vpop.permute.xlu0 %1940
    %1942 = vrot.lane.b32.xlu0 %v1556, 48
    %v1943 = vpop.permute.xlu0 %1942
    %1944 = vrot.lane.b32.xlu0 %v1557, 48
    %v1945 = vpop.permute.xlu0 %1944
    %1946 = vrot.lane.b32.xlu0 %v1558, 48
    %v1947 = vpop.permute.xlu0 %1946
    %1948 = vrot.lane.b32.xlu0 %v1559, 48
    %v1949 = vpop.permute.xlu0 %1948
    %1950 = vrot.lane.b32.xlu0 %v1560, 48
    %v1951 = vpop.permute.xlu0 %1950
    %1952 = vrot.lane.b32.xlu0 %v1561, 48
    %v1953 = vpop.permute.xlu0 %1952
    %1954 = vrot.lane.b32.xlu0 %v1562, 48
    %v1955 = vpop.permute.xlu0 %1954
    %1956 = vrot.lane.b32.xlu0 %v1563, 48
    %v1957 = vpop.permute.xlu0 %1956
    %1958 = vrot.lane.b32.xlu0 %v1564, 48
    %v1959 = vpop.permute.xlu0 %1958
    %1960 = vrot.lane.b32.xlu0 %v1565, 48
    %v1961 = vpop.permute.xlu0 %1960
    %1962 = vrot.lane.b32.xlu0 %v1566, 48
    %v1963 = vpop.permute.xlu0 %1962
    %1964 = vrot.lane.b32.xlu0 %v1567, 48
    %v1965 = vpop.permute.xlu0 %1964
    %1966 = vrot.lane.b32.xlu0 %v1568, 48
    %v1967 = vpop.permute.xlu0 %1966
    %1968 = vrot.lane.b32.xlu0 %v1569, 48
    %v1969 = vpop.permute.xlu0 %1968
    %2002 = vrot.lane.b32.xlu0 %v1570, 56
    %v2003 = vpop.permute.xlu0 %2002
    %2004 = vrot.lane.b32.xlu0 %v1571, 56
    %v2005 = vpop.permute.xlu0 %2004
    %2006 = vrot.lane.b32.xlu0 %v1572, 56
    %v2007 = vpop.permute.xlu0 %2006
    %2008 = vrot.lane.b32.xlu0 %v1573, 56
    %v2009 = vpop.permute.xlu0 %2008
    %2010 = vrot.lane.b32.xlu0 %v1574, 56
    %v2011 = vpop.permute.xlu0 %2010
    %2012 = vrot.lane.b32.xlu0 %v1575, 56
    %v2013 = vpop.permute.xlu0 %2012
    %2014 = vrot.lane.b32.xlu0 %v1576, 56
    %v2015 = vpop.permute.xlu0 %2014
    %2016 = vrot.lane.b32.xlu0 %v1577, 56
    %v2017 = vpop.permute.xlu0 %2016
    %2018 = vrot.lane.b32.xlu0 %v1578, 56
    %v2019 = vpop.permute.xlu0 %2018
    %2020 = vrot.lane.b32.xlu0 %v1579, 56
    %v2021 = vpop.permute.xlu0 %2020
    %2022 = vrot.lane.b32.xlu0 %v1580, 56
    %v2023 = vpop.permute.xlu0 %2022
    %2024 = vrot.lane.b32.xlu0 %v1581, 56
    %v2025 = vpop.permute.xlu0 %2024
    %2026 = vrot.lane.b32.xlu0 %v1582, 56
    %v2027 = vpop.permute.xlu0 %2026
    %2028 = vrot.lane.b32.xlu0 %v1583, 56
    %v2029 = vpop.permute.xlu0 %2028
    %2030 = vrot.lane.b32.xlu0 %v1584, 56
    %v2031 = vpop.permute.xlu0 %2030
    %2032 = vrot.lane.b32.xlu0 %v1585, 56
    %v2033 = vpop.permute.xlu0 %2032
    %2066 = vrot.lane.b32.xlu0 %v1586, 64
    %v2067 = vpop.permute.xlu0 %2066
    %2068 = vrot.lane.b32.xlu0 %v1587, 64
    %v2069 = vpop.permute.xlu0 %2068
    %2070 = vrot.lane.b32.xlu0 %v1588, 64
    %v2071 = vpop.permute.xlu0 %2070
    %2072 = vrot.lane.b32.xlu0 %v1589, 64
    %v2073 = vpop.permute.xlu0 %2072
    %2074 = vrot.lane.b32.xlu0 %v1590, 64
    %v2075 = vpop.permute.xlu0 %2074
    %2076 = vrot.lane.b32.xlu0 %v1591, 64
    %v2077 = vpop.permute.xlu0 %2076
    %2078 = vrot.lane.b32.xlu0 %v1592, 64
    %v2079 = vpop.permute.xlu0 %2078
    %2080 = vrot.lane.b32.xlu0 %v1593, 64
    %v2081 = vpop.permute.xlu0 %2080
    %2082 = vrot.lane.b32.xlu0 %v1594, 64
    %v2083 = vpop.permute.xlu0 %2082
    %2084 = vrot.lane.b32.xlu0 %v1595, 64
    %v2085 = vpop.permute.xlu0 %2084
    %2086 = vrot.lane.b32.xlu0 %v1596, 64
    %v2087 = vpop.permute.xlu0 %2086
    %2088 = vrot.lane.b32.xlu0 %v1597, 64
    %v2089 = vpop.permute.xlu0 %2088
    %2090 = vrot.lane.b32.xlu0 %v1598, 64
    %v2091 = vpop.permute.xlu0 %2090
    %2092 = vrot.lane.b32.xlu0 %v1599, 64
    %v2093 = vpop.permute.xlu0 %2092
    %2094 = vrot.lane.b32.xlu0 %v1600, 64
    %v2095 = vpop.permute.xlu0 %2094
    %2096 = vrot.lane.b32.xlu0 %v1601, 64
    %v2097 = vpop.permute.xlu0 %2096
    %v2114 = vsel %vm887, %v1457, %v1619
    %v2115 = vsel %vm887, %v1458, %v1621
    %v2116 = vsel %vm887, %v1459, %v1623
    %v2117 = vsel %vm887, %v1460, %v1625
    %v2118 = vsel %vm887, %v1461, %v1627
    %v2119 = vsel %vm887, %v1462, %v1629
    %v2120 = vsel %vm887, %v1463, %v1631
    %v2121 = vsel %vm887, %v1464, %v1633
    %v2122 = vsel %vm887, %v1465, %v1635
    %v2123 = vsel %vm887, %v1466, %v1637
    %v2124 = vsel %vm887, %v1467, %v1639
    %v2125 = vsel %vm887, %v1468, %v1641
    %v2126 = vsel %vm887, %v1469, %v1643
    %v2127 = vsel %vm887, %v1470, %v1645
    %v2128 = vsel %vm887, %v1471, %v1647
    %v2129 = vsel %vm887, %v1472, %v1649
    %v2130 = vsel %vm921, %v2114, %v1683
    %v2131 = vsel %vm921, %v2115, %v1685
    %v2132 = vsel %vm921, %v2116, %v1687
    %v2133 = vsel %vm921, %v2117, %v1689
    %v2134 = vsel %vm921, %v2118, %v1691
    %v2135 = vsel %vm921, %v2119, %v1693
    %v2136 = vsel %vm921, %v2120, %v1695
    %v2137 = vsel %vm921, %v2121, %v1697
    %v2138 = vsel %vm921, %v2122, %v1699
    %v2139 = vsel %vm921, %v2123, %v1701
    %v2140 = vsel %vm921, %v2124, %v1703
    %v2141 = vsel %vm921, %v2125, %v1705
    %v2142 = vsel %vm921, %v2126, %v1707
    %v2143 = vsel %vm921, %v2127, %v1709
    %v2144 = vsel %vm921, %v2128, %v1711
    %v2145 = vsel %vm921, %v2129, %v1713
    %v2146 = vsel %vm955, %v2130, %v1747
    %v2147 = vsel %vm955, %v2131, %v1749
    %v2148 = vsel %vm955, %v2132, %v1751
    %v2149 = vsel %vm955, %v2133, %v1753
    %v2150 = vsel %vm955, %v2134, %v1755
    %v2151 = vsel %vm955, %v2135, %v1757
    %v2152 = vsel %vm955, %v2136, %v1759
    %v2153 = vsel %vm955, %v2137, %v1761
    %v2154 = vsel %vm955, %v2138, %v1763
    %v2155 = vsel %vm955, %v2139, %v1765
    %v2156 = vsel %vm955, %v2140, %v1767
    %v2157 = vsel %vm955, %v2141, %v1769
    %v2158 = vsel %vm955, %v2142, %v1771
    %v2159 = vsel %vm955, %v2143, %v1773
    %v2160 = vsel %vm955, %v2144, %v1775
    %v2161 = vsel %vm955, %v2145, %v1777
    %v2162 = vsel %vm989, %v2146, %v1811
    %v2163 = vsel %vm989, %v2147, %v1813
    %v2164 = vsel %vm989, %v2148, %v1815
    %v2165 = vsel %vm989, %v2149, %v1817
    %v2166 = vsel %vm989, %v2150, %v1819
    %v2167 = vsel %vm989, %v2151, %v1821
    %v2168 = vsel %vm989, %v2152, %v1823
    %v2169 = vsel %vm989, %v2153, %v1825
    %v2170 = vsel %vm989, %v2154, %v1827
    %v2171 = vsel %vm989, %v2155, %v1829
    %v2172 = vsel %vm989, %v2156, %v1831
    %v2173 = vsel %vm989, %v2157, %v1833
    %v2174 = vsel %vm989, %v2158, %v1835
    %v2175 = vsel %vm989, %v2159, %v1837
    %v2176 = vsel %vm989, %v2160, %v1839
    %v2177 = vsel %vm989, %v2161, %v1841
    %vm2178 = vcmask 326656
    %v2179 = vsel %vm2178, %v2162, %v1875
    %v2180 = vsel %vm2178, %v2163, %v1877
    %v2181 = vsel %vm2178, %v2164, %v1879
    %v2182 = vsel %vm2178, %v2165, %v1881
    %v2183 = vsel %vm2178, %v2166, %v1883
    %v2184 = vsel %vm2178, %v2167, %v1885
    %v2185 = vsel %vm2178, %v2168, %v1887
    %v2186 = vsel %vm2178, %v2169, %v1889
    %v2187 = vsel %vm2178, %v2170, %v1891
    %v2188 = vsel %vm2178, %v2171, %v1893
    %v2189 = vsel %vm2178, %v2172, %v1895
    %v2190 = vsel %vm2178, %v2173, %v1897
    %v2191 = vsel %vm2178, %v2174, %v1899
    %v2192 = vsel %vm2178, %v2175, %v1901
    %v2193 = vsel %vm2178, %v2176, %v1903
    %v2194 = vsel %vm2178, %v2177, %v1905
    %vm2195 = vcmask 392192
    %v2196 = vsel %vm2195, %v2179, %v1939
    %v2197 = vsel %vm2195, %v2180, %v1941
    %v2198 = vsel %vm2195, %v2181, %v1943
    %v2199 = vsel %vm2195, %v2182, %v1945
    %v2200 = vsel %vm2195, %v2183, %v1947
    %v2201 = vsel %vm2195, %v2184, %v1949
    %v2202 = vsel %vm2195, %v2185, %v1951
    %v2203 = vsel %vm2195, %v2186, %v1953
    %v2204 = vsel %vm2195, %v2187, %v1955
    %v2205 = vsel %vm2195, %v2188, %v1957
    %v2206 = vsel %vm2195, %v2189, %v1959
    %v2207 = vsel %vm2195, %v2190, %v1961
    %v2208 = vsel %vm2195, %v2191, %v1963
    %v2209 = vsel %vm2195, %v2192, %v1965
    %v2210 = vsel %vm2195, %v2193, %v1967
    %v2211 = vsel %vm2195, %v2194, %v1969
    %vm2212 = vcmask 457728
    %v2213 = vsel %vm2212, %v2196, %v2003
    %v2214 = vsel %vm2212, %v2197, %v2005
    %v2215 = vsel %vm2212, %v2198, %v2007
    %v2216 = vsel %vm2212, %v2199, %v2009
    %v2217 = vsel %vm2212, %v2200, %v2011
    %v2218 = vsel %vm2212, %v2201, %v2013
    %v2219 = vsel %vm2212, %v2202, %v2015
    %v2220 = vsel %vm2212, %v2203, %v2017
    %v2221 = vsel %vm2212, %v2204, %v2019
    %v2222 = vsel %vm2212, %v2205, %v2021
    %v2223 = vsel %vm2212, %v2206, %v2023
    %v2224 = vsel %vm2212, %v2207, %v2025
    %v2225 = vsel %vm2212, %v2208, %v2027
    %v2226 = vsel %vm2212, %v2209, %v2029
    %v2227 = vsel %vm2212, %v2210, %v2031
    %v2228 = vsel %vm2212, %v2211, %v2033
    %vm2229 = vcmask 523264
    %v2230 = vsel %vm2229, %v2213, %v2067
    %v2231 = vsel %vm2229, %v2214, %v2069
    %v2232 = vsel %vm2229, %v2215, %v2071
    %v2233 = vsel %vm2229, %v2216, %v2073
    %v2234 = vsel %vm2229, %v2217, %v2075
    %v2235 = vsel %vm2229, %v2218, %v2077
    %v2236 = vsel %vm2229, %v2219, %v2079
    %v2237 = vsel %vm2229, %v2220, %v2081
    %v2238 = vsel %vm2229, %v2221, %v2083
    %v2239 = vsel %vm2229, %v2222, %v2085
    %v2240 = vsel %vm2229, %v2223, %v2087
    %v2241 = vsel %vm2229, %v2224, %v2089
    %v2242 = vsel %vm2229, %v2225, %v2091
    %v2243 = vsel %vm2229, %v2226, %v2093
    %v2244 = vsel %vm2229, %v2227, %v2095
    %v2245 = vsel %vm2229, %v2228, %v2097
    %v2246 = vld [vmem:[%s4] sm:$0xff]
    %v2247 = vld [vmem:[%s4 + $0x8] sm:$0xff]
    %v2248 = vld [vmem:[%s4 + $0x10] sm:$0xff]
    %v2249 = vld [vmem:[%s4 + $0x18] sm:$0xff]
    %v2250 = vld [vmem:[%s4 + $0x20] sm:$0xff]
    %v2251 = vld [vmem:[%s4 + $0x28] sm:$0xff]
    %v2252 = vld [vmem:[%s4 + $0x30] sm:$0xff]
    %v2253 = vld [vmem:[%s4 + $0x38] sm:$0xff]
    %v2254 = vld [vmem:[%s4 + $0x40] sm:$0xff]
    %vm2255 = vcmask 588800
    %v2257 = vsel %vm2255, %v2230, 0
    %v2260 = vsel %vm2255, %v2231, 0
    %v2263 = vsel %vm2255, %v2232, 0
    %v2266 = vsel %vm2255, %v2233, 0
    %v2269 = vsel %vm2255, %v2234, 0
    %v2272 = vsel %vm2255, %v2235, 0
    %v2275 = vsel %vm2255, %v2236, 0
    %v2278 = vsel %vm2255, %v2237, 0
    %v2281 = vsel %vm2255, %v2238, 0
    %v2284 = vsel %vm2255, %v2239, 0
    %v2287 = vsel %vm2255, %v2240, 0
    %v2290 = vsel %vm2255, %v2241, 0
    %v2293 = vsel %vm2255, %v2242, 0
    %v2296 = vsel %vm2255, %v2243, 0
    %v2299 = vsel %vm2255, %v2244, 0
    %v2302 = vsel %vm2255, %v2245, 0
    %2304 = vmatprep.subr.mxu0 0.0
    %2305 = vmatpush1.msra.mxu0 %v2246
    %2306 = vmatprep.subr.mxu0 0.0
    %2307 = vmatpush1.msra.mxu0 %v2247
    %2308 = vmatprep.subr.mxu0 0.0
    %2309 = vmatpush1.msra.mxu0 %v2248
    %2310 = vmatprep.subr.mxu0 0.0
    %2311 = vmatpush1.msra.mxu0 %v2249
    %2312 = vmatprep.subr.mxu0 0.0
    %2313 = vmatpush1.msra.mxu0 %v2250
    %2314 = vmatprep.subr.mxu0 0.0
    %2315 = vmatpush1.msra.mxu0 %v2251
    %2316 = vmatprep.subr.mxu0 0.0
    %2317 = vmatpush1.msra.mxu0 %v2252
    %2318 = vmatprep.subr.mxu0 0.0
    %2319 = vmatpush1.msra.mxu0 %v2253
    %2320 = vmatprep.subr.mxu0 0.0
    %2321 = vmatpush1.msra.mxu0 %v2254
    %2322 = vmatprep.subr.mxu0 0.0
    %2323 = vmatpush1.msra.mxu0 0.0
    %2324 = vmatprep.subr.mxu0 0.0
    %2325 = vmatpush1.msra.mxu0 0.0
    %2326 = vmatprep.subr.mxu0 0.0
    %2327 = vmatpush1.msra.mxu0 0.0
    %2328 = vmatprep.subr.mxu0 0.0
    %2329 = vmatpush1.msra.mxu0 0.0
    %2330 = vmatprep.subr.mxu0 0.0
    %2331 = vmatpush1.msra.mxu0 0.0
    %2332 = vmatprep.subr.mxu0 0.0
    %2333 = vmatpush1.msra.mxu0 0.0
    %2334 = vmatprep.subr.mxu0 0.0
    %2335 = vmatpush1.msra.mxu0 0.0
    %2336 = vmatprep.subr.mxu0 0.0
    %2337 = vmatpush1.msra.mxu0 0.0
    %2338 = vmatprep.subr.mxu0 0.0
    %2339 = vmatpush1.msra.mxu0 0.0
    %2340 = vmatprep.subr.mxu0 0.0
    %2341 = vmatpush1.msra.mxu0 0.0
    %2342 = vmatprep.subr.mxu0 0.0
    %2343 = vmatpush1.msra.mxu0 0.0
    %2344 = vmatprep.subr.mxu0 0.0
    %2345 = vmatpush1.msra.mxu0 0.0
    %2346 = vmatprep.subr.mxu0 0.0
    %2347 = vmatpush1.msra.mxu0 0.0
    %2348 = vmatprep.subr.mxu0 0.0
    %2349 = vmatpush1.msra.mxu0 0.0
    %2350 = vmatprep.subr.mxu0 0.0
    %2351 = vmatpush1.msra.mxu0 0.0
    %2352 = vmatprep.subr.mxu0 0.0
    %2353 = vmatpush1.msra.mxu0 0.0
    %2354 = vmatprep.subr.mxu0 0.0
    %2355 = vmatpush1.msra.mxu0 0.0
    %2356 = vmatprep.subr.mxu0 0.0
    %2357 = vmatpush1.msra.mxu0 0.0
    %2358 = vmatprep.subr.mxu0 0.0
    %2359 = vmatpush1.msra.mxu0 0.0
    %2360 = vmatprep.subr.mxu0 0.0
    %2361 = vmatpush1.msra.mxu0 0.0
    %2362 = vmatprep.subr.mxu0 0.0
    %2363 = vmatpush1.msra.mxu0 0.0
    %2364 = vmatprep.subr.mxu0 0.0
    %2365 = vmatpush1.msra.mxu0 0.0
    %2366 = vmatprep.subr.mxu0 0.0
    %2367 = vmatpush1.msra.mxu0 0.0
    %2368 = vmatprep.mubr.f32.mxu0 0.0
    %2369 = vmatmul.mubr.f32.gmra.mrb[0].mxu0 %v2257
    %v2370 = vpop.f32.mrb[0].mxu0
    %v2371 = vadd.f32 0.0, %v2370
    %v2372 = vpop.f32.mrb[0].mxu0
    %2373 = vmatprep.mubr.f32.mxu0 0.0
    %2374 = vmatmul.mubr.f32.gmra.mrb[0].mxu0 %v2260
    %v2375 = vpop.f32.mrb[0].mxu0
    %v2376 = vadd.f32 0.0, %v2375
    %v2377 = vpop.f32.mrb[0].mxu0
    %2378 = vmatprep.mubr.f32.mxu0 0.0
    %2379 = vmatmul.mubr.f32.gmra.mrb[0].mxu0 %v2263
    %v2380 = vpop.f32.mrb[0].mxu0
    %v2381 = vadd.f32 0.0, %v2380
    %v2382 = vpop.f32.mrb[0].mxu0
    %2383 = vmatprep.mubr.f32.mxu0 0.0
    %2384 = vmatmul.mubr.f32.gmra.mrb[0].mxu0 %v2266
    %v2385 = vpop.f32.mrb[0].mxu0
    %v2386 = vadd.f32 0.0, %v2385
    %v2387 = vpop.f32.mrb[0].mxu0
    %2388 = vmatprep.mubr.f32.mxu0 0.0
    %2389 = vmatmul.mubr.f32.gmra.mrb[0].mxu0 %v2269
    %v2390 = vpop.f32.mrb[0].mxu0
    %v2391 = vadd.f32 0.0, %v2390
    %v2392 = vpop.f32.mrb[0].mxu0
    %2393 = vmatprep.mubr.f32.mxu0 0.0
    %2394 = vmatmul.mubr.f32.gmra.mrb[0].mxu0 %v2272
    %v2395 = vpop.f32.mrb[0].mxu0
    %v2396 = vadd.f32 0.0, %v2395
    %v2397 = vpop.f32.mrb[0].mxu0
    %2398 = vmatprep.mubr.f32.mxu0 0.0
    %2399 = vmatmul.mubr.f32.gmra.mrb[0].mxu0 %v2275
    %v2400 = vpop.f32.mrb[0].mxu0
    %v2401 = vadd.f32 0.0, %v2400
    %v2402 = vpop.f32.mrb[0].mxu0
    %2403 = vmatprep.mubr.f32.mxu0 0.0
    %2404 = vmatmul.mubr.f32.gmra.mrb[0].mxu0 %v2278
    %v2405 = vpop.f32.mrb[0].mxu0
    %v2406 = vadd.f32 0.0, %v2405
    %v2407 = vpop.f32.mrb[0].mxu0
    %2408 = vmatprep.mubr.f32.mxu0 0.0
    %2409 = vmatmul.mubr.f32.gmra.mrb[0].mxu0 %v2281
    %v2410 = vpop.f32.mrb[0].mxu0
    %v2411 = vadd.f32 0.0, %v2410
    %v2412 = vpop.f32.mrb[0].mxu0
    %2413 = vmatprep.mubr.f32.mxu0 0.0
    %2414 = vmatmul.mubr.f32.gmra.mrb[0].mxu0 %v2284
    %v2415 = vpop.f32.mrb[0].mxu0
    %v2416 = vadd.f32 0.0, %v2415
    %v2417 = vpop.f32.mrb[0].mxu0
    %2418 = vmatprep.mubr.f32.mxu0 0.0
    %2419 = vmatmul.mubr.f32.gmra.mrb[0].mxu0 %v2287
    %v2420 = vpop.f32.mrb[0].mxu0
    %v2421 = vadd.f32 0.0, %v2420
    %v2422 = vpop.f32.mrb[0].mxu0
    %2423 = vmatprep.mubr.f32.mxu0 0.0
    %2424 = vmatmul.mubr.f32.gmra.mrb[0].mxu0 %v2290
    %v2425 = vpop.f32.mrb[0].mxu0
    %v2426 = vadd.f32 0.0, %v2425
    %v2427 = vpop.f32.mrb[0].mxu0
    %2428 = vmatprep.mubr.f32.mxu0 0.0
    %2429 = vmatmul.mubr.f32.gmra.mrb[0].mxu0 %v2293
    %v2430 = vpop.f32.mrb[0].mxu0
    %v2431 = vadd.f32 0.0, %v2430
    %v2432 = vpop.f32.mrb[0].mxu0
    %2433 = vmatprep.mubr.f32.mxu0 0.0
    %2434 = vmatmul.mubr.f32.gmra.mrb[0].mxu0 %v2296
    %v2435 = vpop.f32.mrb[0].mxu0
    %v2436 = vadd.f32 0.0, %v2435
    %v2437 = vpop.f32.mrb[0].mxu0
    %2438 = vmatprep.mubr.f32.mxu0 0.0
    %2439 = vmatmul.mubr.f32.gmra.mrb[0].mxu0 %v2299
    %v2440 = vpop.f32.mrb[0].mxu0
    %v2441 = vadd.f32 0.0, %v2440
    %v2442 = vpop.f32.mrb[0].mxu0
    %2443 = vmatprep.mubr.f32.mxu0 0.0
    %2444 = vmatmul.mubr.f32.gmra.mrb[0].mxu0 %v2302
    %v2445 = vpop.f32.mrb[0].mxu0
    %v2446 = vadd.f32 0.0, %v2445
    %v2447 = vpop.f32.mrb[0].mxu0
    %2448 = vdwg.mxu0
    %v2449 = vsel %vm887, %v2371, 0.0
    %v2450 = vsel %vm887, %v2376, 0.0
    %v2451 = vadd.f32 %v2449, %v2450
    %v2452 = vsel %vm887, %v2381, 0.0
    %v2453 = vadd.f32 %v2451, %v2452
    %v2454 = vsel %vm887, %v2386, 0.0
    %v2455 = vadd.f32 %v2453, %v2454
    %v2456 = vsel %vm887, %v2391, 0.0
    %v2457 = vadd.f32 %v2455, %v2456
    %v2458 = vsel %vm887, %v2396, 0.0
    %v2459 = vadd.f32 %v2457, %v2458
    %v2460 = vsel %vm887, %v2401, 0.0
    %v2461 = vadd.f32 %v2459, %v2460
    %v2462 = vsel %vm887, %v2406, 0.0
    %v2463 = vadd.f32 %v2461, %v2462
    %v2464 = vsel %vm887, %v2411, 0.0
    %v2465 = vadd.f32 %v2463, %v2464
    %v2466 = vsel %vm887, %v2416, 0.0
    %v2467 = vadd.f32 %v2465, %v2466
    %v2468 = vsel %vm887, %v2421, 0.0
    %v2469 = vadd.f32 %v2467, %v2468
    %v2470 = vsel %vm887, %v2426, 0.0
    %v2471 = vadd.f32 %v2469, %v2470
    %v2472 = vsel %vm887, %v2431, 0.0
    %v2473 = vadd.f32 %v2471, %v2472
    %v2474 = vsel %vm887, %v2436, 0.0
    %v2475 = vadd.f32 %v2473, %v2474
    %v2476 = vsel %vm887, %v2441, 0.0
    %v2477 = vadd.f32 %v2475, %v2476
    %v2478 = vsel %vm887, %v2446, 0.0
    %v2479 = vadd.f32 %v2477, %v2478
    %v2480 = vrot.slane %v2479, 4
    %v2481 = vadd.f32 %v2479, %v2480
    %v2482 = vrot.slane %v2481, 2
    %v2483 = vadd.f32 %v2481, %v2482
    %v2484 = vrot.slane %v2483, 1
    %v2485 = vadd.f32 %v2483, %v2484
    %v2486 = vmul.f32 %v2371, %v2371
    %v2487 = vmul.f32 %v2376, %v2376
    %v2488 = vmul.f32 %v2381, %v2381
    %v2489 = vmul.f32 %v2386, %v2386
    %v2490 = vmul.f32 %v2391, %v2391
    %v2491 = vmul.f32 %v2396, %v2396
    %v2492 = vmul.f32 %v2401, %v2401
    %v2493 = vmul.f32 %v2406, %v2406
    %v2494 = vmul.f32 %v2411, %v2411
    %v2495 = vmul.f32 %v2416, %v2416
    %v2496 = vmul.f32 %v2421, %v2421
    %v2497 = vmul.f32 %v2426, %v2426
    %v2498 = vmul.f32 %v2431, %v2431
    %v2499 = vmul.f32 %v2436, %v2436
    %v2500 = vmul.f32 %v2441, %v2441
    %v2501 = vmul.f32 %v2446, %v2446
    %v2502 = vsel %vm887, %v2486, 0.0
    %v2503 = vsel %vm887, %v2487, 0.0
    %v2504 = vadd.f32 %v2502, %v2503
    %v2505 = vsel %vm887, %v2488, 0.0
    %v2506 = vadd.f32 %v2504, %v2505
    %v2507 = vsel %vm887, %v2489, 0.0
    %v2508 = vadd.f32 %v2506, %v2507
    %v2509 = vsel %vm887, %v2490, 0.0
    %v2510 = vadd.f32 %v2508, %v2509
    %v2511 = vsel %vm887, %v2491, 0.0
    %v2512 = vadd.f32 %v2510, %v2511
    %v2513 = vsel %vm887, %v2492, 0.0
    %v2514 = vadd.f32 %v2512, %v2513
    %v2515 = vsel %vm887, %v2493, 0.0
    %v2516 = vadd.f32 %v2514, %v2515
    %v2517 = vsel %vm887, %v2494, 0.0
    %v2518 = vadd.f32 %v2516, %v2517
    %v2519 = vsel %vm887, %v2495, 0.0
    %v2520 = vadd.f32 %v2518, %v2519
    %v2521 = vsel %vm887, %v2496, 0.0
    %v2522 = vadd.f32 %v2520, %v2521
    %v2523 = vsel %vm887, %v2497, 0.0
    %v2524 = vadd.f32 %v2522, %v2523
    %v2525 = vsel %vm887, %v2498, 0.0
    %v2526 = vadd.f32 %v2524, %v2525
    %v2527 = vsel %vm887, %v2499, 0.0
    %v2528 = vadd.f32 %v2526, %v2527
    %v2529 = vsel %vm887, %v2500, 0.0
    %v2530 = vadd.f32 %v2528, %v2529
    %v2531 = vsel %vm887, %v2501, 0.0
    %v2532 = vadd.f32 %v2530, %v2531
    %v2533 = vrot.slane %v2532, 4
    %v2534 = vadd.f32 %v2532, %v2533
    %v2535 = vrot.slane %v2534, 2
    %v2536 = vadd.f32 %v2534, %v2535
    %v2537 = vrot.slane %v2536, 1
    %v2538 = vadd.f32 %v2536, %v2537
    %v2539 = vmul.f32 %v2485, 0.0078125
    %v2540 = vmul.f32 %v2538, 0.0078125
    %v2541 = vmul.f32 %v2539, %v2539
    %v2542 = vsub.f32 %v2540, %v2541
    %v2543 = vsub.f32 %v2371, %v2539
    %v2544 = vsub.f32 %v2376, %v2539
    %v2545 = vsub.f32 %v2381, %v2539
    %v2546 = vsub.f32 %v2386, %v2539
    %v2547 = vsub.f32 %v2391, %v2539
    %v2548 = vsub.f32 %v2396, %v2539
    %v2549 = vsub.f32 %v2401, %v2539
    %v2550 = vsub.f32 %v2406, %v2539
    %v2551 = vsub.f32 %v2411, %v2539
    %v2552 = vsub.f32 %v2416, %v2539
    %v2553 = vsub.f32 %v2421, %v2539
    %v2554 = vsub.f32 %v2426, %v2539
    %v2555 = vsub.f32 %v2431, %v2539
    %v2556 = vsub.f32 %v2436, %v2539
    %v2557 = vsub.f32 %v2441, %v2539
    %v2558 = vsub.f32 %v2446, %v2539
    %v2559 = vadd.f32 %v2542, 1e-05
    %v2560 = vrsqrt.pop %v2559
    %v2561 = vmul.f32 %v2543, %v2560
    %v2562 = vmul.f32 %v2544, %v2560
    %v2563 = vmul.f32 %v2545, %v2560
    %v2564 = vmul.f32 %v2546, %v2560
    %v2565 = vmul.f32 %v2547, %v2560
    %v2566 = vmul.f32 %v2548, %v2560
    %v2567 = vmul.f32 %v2549, %v2560
    %v2568 = vmul.f32 %v2550, %v2560
    %v2569 = vmul.f32 %v2551, %v2560
    %v2570 = vmul.f32 %v2552, %v2560
    %v2571 = vmul.f32 %v2553, %v2560
    %v2572 = vmul.f32 %v2554, %v2560
    %v2573 = vmul.f32 %v2555, %v2560
    %v2574 = vmul.f32 %v2556, %v2560
    %v2575 = vmul.f32 %v2557, %v2560
    %v2576 = vmul.f32 %v2558, %v2560
    %v2577 = vld [vmem:[%s5] sm:$0x1]
    %v2579 = vlaneseq
    %v2580 = vshrl.u32 %v2579, 7
    %v2581 = vsub.s32 0, %v2580
    %v2582 = vrot.slane %v2577, %v2581
    %v2584 = vmul.f32 %v2561, %v2582
    %v2585 = vmul.f32 %v2562, %v2582
    %v2586 = vmul.f32 %v2563, %v2582
    %v2587 = vmul.f32 %v2564, %v2582
    %v2588 = vmul.f32 %v2565, %v2582
    %v2589 = vmul.f32 %v2566, %v2582
    %v2590 = vmul.f32 %v2567, %v2582
    %v2591 = vmul.f32 %v2568, %v2582
    %v2592 = vmul.f32 %v2569, %v2582
    %v2593 = vmul.f32 %v2570, %v2582
    %v2594 = vmul.f32 %v2571, %v2582
    %v2595 = vmul.f32 %v2572, %v2582
    %v2596 = vmul.f32 %v2573, %v2582
    %v2597 = vmul.f32 %v2574, %v2582
    %v2598 = vmul.f32 %v2575, %v2582
    %v2599 = vmul.f32 %v2576, %v2582
    %v2600 = vld [vmem:[%s6] sm:$0x1]
    %v2602 = vlaneseq
    %v2603 = vshrl.u32 %v2602, 7
    %v2604 = vsub.s32 0, %v2603
    %v2605 = vrot.slane %v2600, %v2604
    %v2607 = vadd.f32 %v2584, %v2605
    %v2608 = vadd.f32 %v2585, %v2605
    %v2609 = vadd.f32 %v2586, %v2605
    %v2610 = vadd.f32 %v2587, %v2605
    %v2611 = vadd.f32 %v2588, %v2605
    %v2612 = vadd.f32 %v2589, %v2605
    %v2613 = vadd.f32 %v2590, %v2605
    %v2614 = vadd.f32 %v2591, %v2605
    %v2615 = vadd.f32 %v2592, %v2605
    %v2616 = vadd.f32 %v2593, %v2605
    %v2617 = vadd.f32 %v2594, %v2605
    %v2618 = vadd.f32 %v2595, %v2605
    %v2619 = vadd.f32 %v2596, %v2605
    %v2620 = vadd.f32 %v2597, %v2605
    %v2621 = vadd.f32 %v2598, %v2605
    %v2622 = vadd.f32 %v2599, %v2605
    %v2623 = vmax.f32 %v2607, 0.0
    %v2624 = vmax.f32 %v2608, 0.0
    %v2625 = vmax.f32 %v2609, 0.0
    %v2626 = vmax.f32 %v2610, 0.0
    %v2627 = vmax.f32 %v2611, 0.0
    %v2628 = vmax.f32 %v2612, 0.0
    %v2629 = vmax.f32 %v2613, 0.0
    %v2630 = vmax.f32 %v2614, 0.0
    %v2631 = vmax.f32 %v2615, 0.0
    %v2632 = vmax.f32 %v2616, 0.0
    %v2633 = vmax.f32 %v2617, 0.0
    %v2634 = vmax.f32 %v2618, 0.0
    %v2635 = vmax.f32 %v2619, 0.0
    %v2636 = vmax.f32 %v2620, 0.0
    %v2637 = vmax.f32 %v2621, 0.0
    %v2638 = vmax.f32 %v2622, 0.0
    %2639 = vxpose.xlu0.b32.start [1/16] %v2623, 128
    %2640 = vxpose.xlu0.b32.cont [2/16] %v2624, 128
    %2641 = vxpose.xlu0.b32.cont [3/16] %v2625, 128
    %2642 = vxpose.xlu0.b32.cont [4/16] %v2626, 128
    %2643 = vxpose.xlu0.b32.cont [5/16] %v2627, 128
    %2644 = vxpose.xlu0.b32.cont [6/16] %v2628, 128
    %2645 = vxpose.xlu0.b32.cont [7/16] %v2629, 128
    %2646 = vxpose.xlu0.b32.cont [8/16] %v2630, 128
    %2647 = vxpose.xlu0.b32.cont [9/16] %v2631, 128
    %2648 = vxpose.xlu0.b32.cont [10/16] %v2632, 128
    %2649 = vxpose.xlu0.b32.cont [11/16] %v2633, 128
    %2650 = vxpose.xlu0.b32.cont [12/16] %v2634, 128
    %2651 = vxpose.xlu0.b32.cont [13/16] %v2635, 128
    %2652 = vxpose.xlu0.b32.cont [14/16] %v2636, 128
    %2653 = vxpose.xlu0.b32.cont [15/16] %v2637, 128
    %2654 = vxpose.xlu0.b32.end [16/16] %v2638, 128
    %v2655 = vpop.trf.xlu0
    %v2656 = vpop.trf.xlu0
    %v2657 = vpop.trf.xlu0
    %v2658 = vpop.trf.xlu0
    %v2659 = vpop.trf.xlu0
    %v2660 = vpop.trf.xlu0
    %v2661 = vpop.trf.xlu0
    %v2662 = vpop.trf.xlu0
    %v2663 = vpop.trf.xlu0
    %v2664 = vpop.trf.xlu0
    %v2665 = vpop.trf.xlu0
    %v2666 = vpop.trf.xlu0
    %v2667 = vpop.trf.xlu0
    %v2668 = vpop.trf.xlu0
    %v2669 = vpop.trf.xlu0
    %v2670 = vpop.trf.xlu0
    %2671 = vst [vmem:[#allocation4] sm:$0xff] %v2655
    // Predicated region
    $region30: #{tpu_custom_call.1} parent=1 // pred_check
      _
    $region31: #{tpu_custom_call.1} parent=1 // pred_check_branch
      %2673 = sbr.rel (0) target = $region33
    $region32: #{tpu_custom_call.1} parent=1 // pred_region
      %s2675 = ssub.s32 128, 128
      %2676 = vsyncadd [#allocation5], %s2675
      %s2678 = sshll.u32 [#allocation4], 4
      %s2679 = int_to_ptr.vmem [resolvable:$true] %s2678
      %2681 = dma.vmem_to_hbm [thread:$0]  %s2679, 128, %s7, [#allocation5]
    $region33: #{tpu_custom_call.1} parent=1 // pred_fallthru
      _
    // Predicated region
    $region34: #{tpu_custom_call.1} parent=1 // pred_check
      _
    $region35: #{tpu_custom_call.1} parent=1 // pred_check_branch
      %2683 = sbr.rel (0) target = $region37
    $region36: #{tpu_custom_call.1} parent=1 // pred_region
      %2684 = dma.done [#allocation5], 128
    $region37: #{tpu_custom_call.1} parent=1 // pred_fallthru
      _
    %2685 = vsyncpa [#allocation5], 1

</llo_original>
